<compile_context>
chip_gen: v7x
topology: tpu7x:2x2x1
jax: 0.10.0
libtpu: 0.0.40
codegen_flags: <defaults>
</compile_context>

<pallas_src>
import jax
import jax.numpy as jnp
from jax import lax
from jax.experimental import pallas as pl
from jax.experimental.pallas import tpu as pltpu

_LANES = 128


def _round_up(x, m):
    return (x + m - 1) // m * m


def _lrelu(y, slope=0.2):
    return jnp.where(y >= 0, y, slope * y)


def _layernorm(y, gamma, beta, eps=1e-5):
    # Single-pass statistics: sum and sum-of-squares -> biased variance
    # (matches torch.nn.LayerNorm).  rsqrt goes to the EUP slot.
    n = y.shape[-1]
    s1 = jnp.sum(y, axis=-1, keepdims=True)
    s2 = jnp.sum(y * y, axis=-1, keepdims=True)
    mu = s1 * (1.0 / n)
    var = s2 * (1.0 / n) - mu * mu
    return (y - mu) * lax.rsqrt(var + eps) * gamma + beta


def h_theta_kernel(scales_ref,                    # SMEM: (num_blocks,)
                   x_ref,                         # (TM, Din_pad)
                   w_in_ref, b_in_ref, g_in_ref, be_in_ref,
                   w1_ref, b1_ref, g1_ref, be1_ref,   # this block's params
                   w2_ref, b2_ref, g2_ref, be2_ref,
                   w_out_ref, b_out_ref,
                   o_ref,                         # (TM, Dout_pad)
                   h_ref):                        # VMEM scratch (TM, H) f32
    j = pl.program_id(1)

    # ---- input layer: Linear -> LayerNorm -> LeakyReLU (Dropout = identity) ----
    @pl.when(j == 0)
    def _input_layer():
        h0 = jnp.dot(x_ref[...].astype(w_in_ref.dtype), w_in_ref[...],
                     preferred_element_type=jnp.float32) + b_in_ref[...]
        h_ref[...] = _lrelu(_layernorm(h0, g_in_ref[...], be_in_ref[...]))

    # ---- one residual block per inner grid step (weights streamed by BlockSpec) ----
    residual = h_ref[...]
    y = jnp.dot(residual.astype(w1_ref.dtype), w1_ref[...],
                preferred_element_type=jnp.float32) + b1_ref[...]
    y = _lrelu(_layernorm(y, g1_ref[...], be1_ref[...]))        # Dropout = identity
    y = jnp.dot(y.astype(w2_ref.dtype), w2_ref[...],
                preferred_element_type=jnp.float32) + b2_ref[...]
    y = _layernorm(y, g2_ref[...], be2_ref[...])
    h_new = _lrelu(y * scales_ref[j] + residual)
    h_ref[...] = h_new

    # ---- final layer (Dropout = identity) ----
    @pl.when(j == pl.num_programs(1) - 1)
    def _final_layer():
        o = jnp.dot(h_new.astype(w_out_ref.dtype), w_out_ref[...],
                    preferred_element_type=jnp.float32) + b_out_ref[...]
        o_ref[...] = o.astype(o_ref.dtype)


def h_theta_res_forward(x, params, *, tile_m=128, dot_dtype=None):
    """x: (N, input_dim) float32.  Returns (N, output_dim) float32.

    dot_dtype: optional (e.g. jnp.bfloat16) dtype used only for the matmul
    operands; all LayerNorm / residual / bias math stays float32.
    """
    N, d_in = x.shape
    nb, H, _ = params["w1"].shape
    d_out = params["w_out"].shape[1]
    if H % _LANES != 0:
        # TODO(synk): support hidden_dim % 128 != 0 via masked LayerNorm stats.
        raise ValueError("hidden_dim must be a multiple of 128")

    din_p = _round_up(max(d_in, _LANES), _LANES)
    dout_p = _round_up(max(d_out, _LANES), _LANES)
    n_p = _round_up(N, tile_m)
    n_row_tiles = n_p // tile_m

    wd = dot_dtype if dot_dtype is not None else params["w_in"].dtype

    # Lane-dense zero padding: padded rows/cols of the weights are zero so the
    # matmul results are unchanged; LayerNorm is over the true H only.
    x_p = jnp.zeros((n_p, din_p), x.dtype).at[:N, :d_in].set(x)
    w_in = jnp.zeros((din_p, H), jnp.float32).at[:d_in, :].set(params["w_in"]).astype(wd)
    w_out = jnp.zeros((H, dout_p), jnp.float32).at[:, :d_out].set(params["w_out"]).astype(wd)
    b_out = jnp.zeros((1, dout_p), jnp.float32).at[:, :d_out].set(params["b_out"])
    w1 = params["w1"].astype(wd)
    w2 = params["w2"].astype(wd)

    full = lambda arr: pl.BlockSpec(arr.shape, lambda i, j: (0,) * arr.ndim)
    per_block_mat = pl.BlockSpec((None, H, H), lambda i, j: (j, 0, 0))
    per_block_vec = pl.BlockSpec((None, 1, H), lambda i, j: (j, 0, 0))

    grid_spec = pltpu.PrefetchScalarGridSpec(
        num_scalar_prefetch=0,
        grid=(n_row_tiles, nb),
        in_specs=[
            pl.BlockSpec(memory_space=pltpu.MemorySpace.SMEM),    # residual scales
            pl.BlockSpec((tile_m, din_p), lambda i, j: (i, 0)),   # x row tile
            full(w_in), full(params["b_in"]),
            full(params["g_in"]), full(params["be_in"]),
            per_block_mat, per_block_vec, per_block_vec, per_block_vec,   # block lin1
            per_block_mat, per_block_vec, per_block_vec, per_block_vec,   # block lin2
            full(w_out), full(b_out),
        ],
        out_specs=pl.BlockSpec((tile_m, dout_p), lambda i, j: (i, 0)),
        scratch_shapes=[pltpu.VMEM((tile_m, H), jnp.float32)],
    )

    # ---- explicit VMEM budget (double-buffered streamed weights + resident rest) ----
    w_item = jnp.dtype(wd).itemsize
    per_block_bytes = 2 * H * H * w_item + 6 * H * 4
    const_bytes = (din_p * H + H * dout_p) * w_item + (3 * H + dout_p) * 4
    act_bytes = tile_m * (din_p + dout_p) * 4
    est = 2 * per_block_bytes + 2 * const_bytes + 2 * act_bytes + tile_m * H * 4
    vmem_limit = int(min(64 * 2 ** 20, max(16 * 2 ** 20, 2 * est)))

    flops = 2 * n_p * (din_p * H + nb * 2 * H * H + H * dout_p)
    bytes_accessed = (n_p * din_p + n_p * dout_p) * 4 + n_row_tiles * (
        nb * per_block_bytes + const_bytes)
    cost = pl.CostEstimate(flops=int(flops),
                           transcendentals=int(n_p * (2 * nb + 1)),
                           bytes_accessed=int(bytes_accessed))

    out_p = pl.pallas_call(
        h_theta_kernel,
        out_shape=jax.ShapeDtypeStruct((n_p, dout_p), jnp.float32),
        grid_spec=grid_spec,
        compiler_params=pltpu.CompilerParams(
            dimension_semantics=("parallel", "arbitrary"),
            vmem_limit_bytes=vmem_limit),
        cost_estimate=cost,
    )(params["scales"], x_p,
      w_in, params["b_in"], params["g_in"], params["be_in"],
      w1, params["b1"], params["g1"], params["be1"],
      w2, params["b2"], params["g2"], params["be2"],
      w_out, b_out)

    return out_p[:N, :d_out]


def init_params(key, input_dim, hidden_dim, output_dim, num_blocks):
    ks = jax.random.split(key, 8)
    s = 0.05
    return {
        "w_in":  s * jax.random.normal(ks[0], (input_dim, hidden_dim), jnp.float32),
        "b_in":  jnp.zeros((1, hidden_dim), jnp.float32),
        "g_in":  jnp.ones((1, hidden_dim), jnp.float32),
        "be_in": jnp.zeros((1, hidden_dim), jnp.float32),
        "w1":  s * jax.random.normal(ks[1], (num_blocks, hidden_dim, hidden_dim), jnp.float32),
        "b1":  jnp.zeros((num_blocks, 1, hidden_dim), jnp.float32),
        "g1":  jnp.ones((num_blocks, 1, hidden_dim), jnp.float32),
        "be1": jnp.zeros((num_blocks, 1, hidden_dim), jnp.float32),
        "w2":  s * jax.random.normal(ks[2], (num_blocks, hidden_dim, hidden_dim), jnp.float32),
        "b2":  0.01 * jax.random.normal(ks[3], (num_blocks, 1, hidden_dim), jnp.float32),
        "g2":  jnp.ones((num_blocks, 1, hidden_dim), jnp.float32),
        "be2": jnp.zeros((num_blocks, 1, hidden_dim), jnp.float32),
        "scales": jnp.full((num_blocks,), 0.5, jnp.float32),
        "w_out": s * jax.random.normal(ks[4], (hidden_dim, output_dim), jnp.float32),
        "b_out": 0.01 * jax.random.normal(ks[5], (1, output_dim), jnp.float32),
    }


def reference_forward(x, p):
    """Pure-JAX reference mirroring the PyTorch module (eval mode)."""
    def ln(y, g, b, eps=1e-5):
        mu = jnp.mean(y, axis=-1, keepdims=True)
        var = jnp.mean((y - mu) ** 2, axis=-1, keepdims=True)
        return (y - mu) * lax.rsqrt(var + eps) * g + b

    h = _lrelu(ln(x @ p["w_in"] + p["b_in"], p["g_in"], p["be_in"]))
    for i in range(p["w1"].shape[0]):
        r = h
        y = _lrelu(ln(h @ p["w1"][i] + p["b1"][i], p["g1"][i], p["be1"][i]))
        y = ln(y @ p["w2"][i] + p["b2"][i], p["g2"][i], p["be2"][i])
        h = _lrelu(y * p["scales"][i] + r)
    return h @ p["w_out"] + p["b_out"]


if __name__ == "__main__":
    # Small shapes consistent with the module (hidden kept at the 128-lane width).
    N, INPUT_DIM, HIDDEN_DIM, OUTPUT_DIM, NUM_BLOCKS = 256, 8, 128, 3, 2

    key = jax.random.PRNGKey(0)
    kx, kp = jax.random.split(key)
    x = jax.random.normal(kx, (N, INPUT_DIM), jnp.float32)
    params = init_params(kp, INPUT_DIM, HIDDEN_DIM, OUTPUT_DIM, NUM_BLOCKS)

    ref = reference_forward(x, params)

    # f32 path (exactness check).
    out = jax.block_until_ready(h_theta_res_forward(x, params, tile_m=128))
    assert out.shape == (N, OUTPUT_DIM)
    assert jnp.allclose(out, ref, rtol=2e-3, atol=2e-3), "f32 mismatch vs reference"

    # bf16-MXU path (v6e/v7x): only dot operands cast, elementwise stays f32.
    out_bf16 = jax.block_until_ready(
        h_theta_res_forward(x, params, tile_m=128, dot_dtype=jnp.bfloat16))
    assert jnp.allclose(out_bf16, ref, rtol=5e-2, atol=5e-2), "bf16 mismatch vs reference"

    print("KERNEL_OK")
</pallas_src>

<mosaic_0001>
module attributes {stable_mosaic.version = 11 : i64} {
  func.func @h_theta_kernel(%arg0: i32, %arg1: i32, %arg2: memref<2xf32, #tpu.memory_space<smem>>, %arg3: memref<128x128xf32, #tpu.memory_space<vmem>>, %arg4: memref<128x128xf32, #tpu.memory_space<vmem>>, %arg5: memref<1x128xf32, #tpu.memory_space<vmem>>, %arg6: memref<1x128xf32, #tpu.memory_space<vmem>>, %arg7: memref<1x128xf32, #tpu.memory_space<vmem>>, %arg8: memref<1x128x128xf32, #tpu.memory_space<vmem>>, %arg9: memref<1x1x128xf32, #tpu.memory_space<vmem>>, %arg10: memref<1x1x128xf32, #tpu.memory_space<vmem>>, %arg11: memref<1x1x128xf32, #tpu.memory_space<vmem>>, %arg12: memref<1x128x128xf32, #tpu.memory_space<vmem>>, %arg13: memref<1x1x128xf32, #tpu.memory_space<vmem>>, %arg14: memref<1x1x128xf32, #tpu.memory_space<vmem>>, %arg15: memref<1x1x128xf32, #tpu.memory_space<vmem>>, %arg16: memref<128x128xf32, #tpu.memory_space<vmem>>, %arg17: memref<1x128xf32, #tpu.memory_space<vmem>>, %arg18: memref<128x128xf32, #tpu.memory_space<vmem>>, %arg19: memref<128x128xf32, #tpu.memory_space<vmem>>) attributes {dimension_semantics = [#tpu.dimension_semantics<parallel>, #tpu.dimension_semantics<arbitrary>], iteration_bounds = array<i64: 2, 2>, scalar_prefetch = 0 : i64, scratch_operands = 1 : i64, tpu.core_type = #tpu.core_type<tc>, window_params = [{transform_indices = @transform_0, window_bounds = array<i64: 2>}, {transform_indices = @transform_1, window_bounds = array<i64: 128, 128>}, {pipeline_mode = #tpu.pipeline_mode<synchronous>, transform_indices = @transform_2, window_bounds = array<i64: 128, 128>}, {pipeline_mode = #tpu.pipeline_mode<synchronous>, transform_indices = @transform_3, window_bounds = array<i64: 1, 128>}, {pipeline_mode = #tpu.pipeline_mode<synchronous>, transform_indices = @transform_4, window_bounds = array<i64: 1, 128>}, {pipeline_mode = #tpu.pipeline_mode<synchronous>, transform_indices = @transform_5, window_bounds = array<i64: 1, 128>}, {transform_indices = @transform_6, window_bounds = array<i64: 1, 128, 128>}, {transform_indices = @transform_7, window_bounds = array<i64: 1, 1, 128>}, {transform_indices = @transform_8, window_bounds = array<i64: 1, 1, 128>}, {transform_indices = @transform_9, window_bounds = array<i64: 1, 1, 128>}, {transform_indices = @transform_10, window_bounds = array<i64: 1, 128, 128>}, {transform_indices = @transform_11, window_bounds = array<i64: 1, 1, 128>}, {transform_indices = @transform_12, window_bounds = array<i64: 1, 1, 128>}, {transform_indices = @transform_13, window_bounds = array<i64: 1, 1, 128>}, {pipeline_mode = #tpu.pipeline_mode<synchronous>, transform_indices = @transform_14, window_bounds = array<i64: 128, 128>}, {pipeline_mode = #tpu.pipeline_mode<synchronous>, transform_indices = @transform_15, window_bounds = array<i64: 1, 128>}, {transform_indices = @transform_16, window_bounds = array<i64: 128, 128>}]} {
    %c0_i32 = arith.constant 0 : i32
    %0 = arith.cmpi eq, %arg1, %c0_i32 : i32
    %1 = arith.extui %0 : i1 to i32
    %c0_i32_0 = arith.constant 0 : i32
    %2 = arith.cmpi ne, %1, %c0_i32_0 : i32
    scf.if %2 {
      %c0_44 = arith.constant 0 : index
      %c0_45 = arith.constant 0 : index
      %89 = vector.load %arg3[%c0_44, %c0_45] : memref<128x128xf32, #tpu.memory_space<vmem>>, vector<128x128xf32>
      %c0_46 = arith.constant 0 : index
      %c0_47 = arith.constant 0 : index
      %90 = vector.load %arg4[%c0_46, %c0_47] : memref<128x128xf32, #tpu.memory_space<vmem>>, vector<128x128xf32>
      %cst_48 = arith.constant dense<0.000000e+00> : vector<128x128xf32>
      %91 = tpu.matmul %89, %90, %cst_48 {dimension_numbers = #tpu.dot_dimension_numbers<[1], [0], [0], [1], [0, 0, 1, 1], [], []>} : vector<128x128xf32>, vector<128x128xf32>, vector<128x128xf32> -> vector<128x128xf32>
      %c0_49 = arith.constant 0 : index
      %c0_50 = arith.constant 0 : index
      %92 = vector.load %arg5[%c0_49, %c0_50] : memref<1x128xf32, #tpu.memory_space<vmem>>, vector<1x128xf32>
      %93 = vector.broadcast %92 : vector<1x128xf32> to vector<128x128xf32>
      %94 = arith.addf %91, %93 : vector<128x128xf32>
      %c0_51 = arith.constant 0 : index
      %c0_52 = arith.constant 0 : index
      %95 = vector.load %arg6[%c0_51, %c0_52] : memref<1x128xf32, #tpu.memory_space<vmem>>, vector<1x128xf32>
      %c0_53 = arith.constant 0 : index
      %c0_54 = arith.constant 0 : index
      %96 = vector.load %arg7[%c0_53, %c0_54] : memref<1x128xf32, #tpu.memory_space<vmem>>, vector<1x128xf32>
      %cst_55 = arith.constant dense<0.000000e+00> : vector<128xf32>
      %97 = vector.multi_reduction <add>, %94, %cst_55 [1] : vector<128x128xf32> to vector<128xf32>
      %98 = vector.shape_cast %97 : vector<128xf32> to vector<128x1xf32>
      %99 = arith.mulf %94, %94 : vector<128x128xf32>
      %cst_56 = arith.constant dense<0.000000e+00> : vector<128xf32>
      %100 = vector.multi_reduction <add>, %99, %cst_56 [1] : vector<128x128xf32> to vector<128xf32>
      %101 = vector.shape_cast %100 : vector<128xf32> to vector<128x1xf32>
      %cst_57 = arith.constant 7.812500e-03 : f32
      %102 = vector.broadcast %cst_57 : f32 to vector<128x1xf32>
      %103 = arith.mulf %98, %102 : vector<128x1xf32>
      %cst_58 = arith.constant 7.812500e-03 : f32
      %104 = vector.broadcast %cst_58 : f32 to vector<128x1xf32>
      %105 = arith.mulf %101, %104 : vector<128x1xf32>
      %106 = arith.mulf %103, %103 : vector<128x1xf32>
      %107 = arith.subf %105, %106 : vector<128x1xf32>
      %108 = vector.broadcast %103 : vector<128x1xf32> to vector<128x128xf32>
      %109 = arith.subf %94, %108 : vector<128x128xf32>
      %cst_59 = arith.constant 9.99999974E-6 : f32
      %110 = vector.broadcast %cst_59 : f32 to vector<128x1xf32>
      %111 = arith.addf %107, %110 : vector<128x1xf32>
      %112 = math.rsqrt %111 : vector<128x1xf32>
      %113 = vector.broadcast %112 : vector<128x1xf32> to vector<128x128xf32>
      %114 = arith.mulf %109, %113 : vector<128x128xf32>
      %115 = vector.broadcast %95 : vector<1x128xf32> to vector<128x128xf32>
      %116 = arith.mulf %114, %115 : vector<128x128xf32>
      %117 = vector.broadcast %96 : vector<1x128xf32> to vector<128x128xf32>
      %118 = arith.addf %116, %117 : vector<128x128xf32>
      %cst_60 = arith.constant 0.000000e+00 : f32
      %119 = vector.broadcast %cst_60 : f32 to vector<128x128xf32>
      %120 = arith.cmpf oge, %118, %119 : vector<128x128xf32>
      %cst_61 = arith.constant 2.000000e-01 : f32
      %121 = vector.broadcast %cst_61 : f32 to vector<128x128xf32>
      %122 = arith.mulf %121, %118 : vector<128x128xf32>
      %123 = arith.select %120, %118, %122 : vector<128x128xi1>, vector<128x128xf32>
      %c0_62 = arith.constant 0 : index
      %c0_63 = arith.constant 0 : index
      %124 = vector.load %arg19[%c0_62, %c0_63] : memref<128x128xf32, #tpu.memory_space<vmem>>, vector<128x128xf32>
      tpu.vector_store %arg19[%c0_62, %c0_63], %123 {strides = array<i32>} : memref<128x128xf32, #tpu.memory_space<vmem>>, vector<128x128xf32>,
    } else {
    }
    %c0 = arith.constant 0 : index
    %c0_1 = arith.constant 0 : index
    %3 = vector.load %arg19[%c0, %c0_1] : memref<128x128xf32, #tpu.memory_space<vmem>>, vector<128x128xf32>
    %c0_2 = arith.constant 0 : index
    %c0_3 = arith.constant 0 : index
    %c0_4 = arith.constant 0 : index
    %4 = vector.load %arg8[%c0_2, %c0_3, %c0_4] : memref<1x128x128xf32, #tpu.memory_space<vmem>>, vector<1x128x128xf32>
    %5 = vector.shape_cast %4 : vector<1x128x128xf32> to vector<128x128xf32>
    %cst = arith.constant dense<0.000000e+00> : vector<128x128xf32>
    %6 = tpu.matmul %3, %5, %cst {dimension_numbers = #tpu.dot_dimension_numbers<[1], [0], [0], [1], [0, 0, 1, 1], [], []>} : vector<128x128xf32>, vector<128x128xf32>, vector<128x128xf32> -> vector<128x128xf32>
    %c0_5 = arith.constant 0 : index
    %c0_6 = arith.constant 0 : index
    %c0_7 = arith.constant 0 : index
    %7 = vector.load %arg9[%c0_5, %c0_6, %c0_7] : memref<1x1x128xf32, #tpu.memory_space<vmem>>, vector<1x1x128xf32>
    %8 = vector.shape_cast %7 : vector<1x1x128xf32> to vector<1x128xf32>
    %9 = vector.broadcast %8 : vector<1x128xf32> to vector<128x128xf32>
    %10 = arith.addf %6, %9 : vector<128x128xf32>
    %c0_8 = arith.constant 0 : index
    %c0_9 = arith.constant 0 : index
    %c0_10 = arith.constant 0 : index
    %11 = vector.load %arg10[%c0_8, %c0_9, %c0_10] : memref<1x1x128xf32, #tpu.memory_space<vmem>>, vector<1x1x128xf32>
    %12 = vector.shape_cast %11 : vector<1x1x128xf32> to vector<1x128xf32>
    %c0_11 = arith.constant 0 : index
    %c0_12 = arith.constant 0 : index
    %c0_13 = arith.constant 0 : index
    %13 = vector.load %arg11[%c0_11, %c0_12, %c0_13] : memref<1x1x128xf32, #tpu.memory_space<vmem>>, vector<1x1x128xf32>
    %14 = vector.shape_cast %13 : vector<1x1x128xf32> to vector<1x128xf32>
    %cst_14 = arith.constant dense<0.000000e+00> : vector<128xf32>
    %15 = vector.multi_reduction <add>, %10, %cst_14 [1] : vector<128x128xf32> to vector<128xf32>
    %16 = vector.shape_cast %15 : vector<128xf32> to vector<128x1xf32>
    %17 = arith.mulf %10, %10 : vector<128x128xf32>
    %cst_15 = arith.constant dense<0.000000e+00> : vector<128xf32>
    %18 = vector.multi_reduction <add>, %17, %cst_15 [1] : vector<128x128xf32> to vector<128xf32>
    %19 = vector.shape_cast %18 : vector<128xf32> to vector<128x1xf32>
    %cst_16 = arith.constant 7.812500e-03 : f32
    %20 = vector.broadcast %cst_16 : f32 to vector<128x1xf32>
    %21 = arith.mulf %16, %20 : vector<128x1xf32>
    %cst_17 = arith.constant 7.812500e-03 : f32
    %22 = vector.broadcast %cst_17 : f32 to vector<128x1xf32>
    %23 = arith.mulf %19, %22 : vector<128x1xf32>
    %24 = arith.mulf %21, %21 : vector<128x1xf32>
    %25 = arith.subf %23, %24 : vector<128x1xf32>
    %26 = vector.broadcast %21 : vector<128x1xf32> to vector<128x128xf32>
    %27 = arith.subf %10, %26 : vector<128x128xf32>
    %cst_18 = arith.constant 9.99999974E-6 : f32
    %28 = vector.broadcast %cst_18 : f32 to vector<128x1xf32>
    %29 = arith.addf %25, %28 : vector<128x1xf32>
    %30 = math.rsqrt %29 : vector<128x1xf32>
    %31 = vector.broadcast %30 : vector<128x1xf32> to vector<128x128xf32>
    %32 = arith.mulf %27, %31 : vector<128x128xf32>
    %33 = vector.broadcast %12 : vector<1x128xf32> to vector<128x128xf32>
    %34 = arith.mulf %32, %33 : vector<128x128xf32>
    %35 = vector.broadcast %14 : vector<1x128xf32> to vector<128x128xf32>
    %36 = arith.addf %34, %35 : vector<128x128xf32>
    %cst_19 = arith.constant 0.000000e+00 : f32
    %37 = vector.broadcast %cst_19 : f32 to vector<128x128xf32>
    %38 = arith.cmpf oge, %36, %37 : vector<128x128xf32>
    %cst_20 = arith.constant 2.000000e-01 : f32
    %39 = vector.broadcast %cst_20 : f32 to vector<128x128xf32>
    %40 = arith.mulf %39, %36 : vector<128x128xf32>
    %41 = arith.select %38, %36, %40 : vector<128x128xi1>, vector<128x128xf32>
    %c0_21 = arith.constant 0 : index
    %c0_22 = arith.constant 0 : index
    %c0_23 = arith.constant 0 : index
    %42 = vector.load %arg12[%c0_21, %c0_22, %c0_23] : memref<1x128x128xf32, #tpu.memory_space<vmem>>, vector<1x128x128xf32>
    %43 = vector.shape_cast %42 : vector<1x128x128xf32> to vector<128x128xf32>
    %cst_24 = arith.constant dense<0.000000e+00> : vector<128x128xf32>
    %44 = tpu.matmul %41, %43, %cst_24 {dimension_numbers = #tpu.dot_dimension_numbers<[1], [0], [0], [1], [0, 0, 1, 1], [], []>} : vector<128x128xf32>, vector<128x128xf32>, vector<128x128xf32> -> vector<128x128xf32>
    %c0_25 = arith.constant 0 : index
    %c0_26 = arith.constant 0 : index
    %c0_27 = arith.constant 0 : index
    %45 = vector.load %arg13[%c0_25, %c0_26, %c0_27] : memref<1x1x128xf32, #tpu.memory_space<vmem>>, vector<1x1x128xf32>
    %46 = vector.shape_cast %45 : vector<1x1x128xf32> to vector<1x128xf32>
    %47 = vector.broadcast %46 : vector<1x128xf32> to vector<128x128xf32>
    %48 = arith.addf %44, %47 : vector<128x128xf32>
    %c0_28 = arith.constant 0 : index
    %c0_29 = arith.constant 0 : index
    %c0_30 = arith.constant 0 : index
    %49 = vector.load %arg14[%c0_28, %c0_29, %c0_30] : memref<1x1x128xf32, #tpu.memory_space<vmem>>, vector<1x1x128xf32>
    %50 = vector.shape_cast %49 : vector<1x1x128xf32> to vector<1x128xf32>
    %c0_31 = arith.constant 0 : index
    %c0_32 = arith.constant 0 : index
    %c0_33 = arith.constant 0 : index
    %51 = vector.load %arg15[%c0_31, %c0_32, %c0_33] : memref<1x1x128xf32, #tpu.memory_space<vmem>>, vector<1x1x128xf32>
    %52 = vector.shape_cast %51 : vector<1x1x128xf32> to vector<1x128xf32>
    %cst_34 = arith.constant dense<0.000000e+00> : vector<128xf32>
    %53 = vector.multi_reduction <add>, %48, %cst_34 [1] : vector<128x128xf32> to vector<128xf32>
    %54 = vector.shape_cast %53 : vector<128xf32> to vector<128x1xf32>
    %55 = arith.mulf %48, %48 : vector<128x128xf32>
    %cst_35 = arith.constant dense<0.000000e+00> : vector<128xf32>
    %56 = vector.multi_reduction <add>, %55, %cst_35 [1] : vector<128x128xf32> to vector<128xf32>
    %57 = vector.shape_cast %56 : vector<128xf32> to vector<128x1xf32>
    %cst_36 = arith.constant 7.812500e-03 : f32
    %58 = vector.broadcast %cst_36 : f32 to vector<128x1xf32>
    %59 = arith.mulf %54, %58 : vector<128x1xf32>
    %cst_37 = arith.constant 7.812500e-03 : f32
    %60 = vector.broadcast %cst_37 : f32 to vector<128x1xf32>
    %61 = arith.mulf %57, %60 : vector<128x1xf32>
    %62 = arith.mulf %59, %59 : vector<128x1xf32>
    %63 = arith.subf %61, %62 : vector<128x1xf32>
    %64 = vector.broadcast %59 : vector<128x1xf32> to vector<128x128xf32>
    %65 = arith.subf %48, %64 : vector<128x128xf32>
    %cst_38 = arith.constant 9.99999974E-6 : f32
    %66 = vector.broadcast %cst_38 : f32 to vector<128x1xf32>
    %67 = arith.addf %63, %66 : vector<128x1xf32>
    %68 = math.rsqrt %67 : vector<128x1xf32>
    %69 = vector.broadcast %68 : vector<128x1xf32> to vector<128x128xf32>
    %70 = arith.mulf %65, %69 : vector<128x128xf32>
    %71 = vector.broadcast %50 : vector<1x128xf32> to vector<128x128xf32>
    %72 = arith.mulf %70, %71 : vector<128x128xf32>
    %73 = vector.broadcast %52 : vector<1x128xf32> to vector<128x128xf32>
    %74 = arith.addf %72, %73 : vector<128x128xf32>
    %75 = arith.index_cast %arg1 : i32 to index
    %76 = memref.load %arg2[%75] : memref<2xf32, #tpu.memory_space<smem>>
    %77 = vector.broadcast %76 : f32 to vector<128x128xf32>
    %78 = arith.mulf %74, %77 : vector<128x128xf32>
    %79 = arith.addf %78, %3 : vector<128x128xf32>
    %cst_39 = arith.constant 0.000000e+00 : f32
    %80 = vector.broadcast %cst_39 : f32 to vector<128x128xf32>
    %81 = arith.cmpf oge, %79, %80 : vector<128x128xf32>
    %cst_40 = arith.constant 2.000000e-01 : f32
    %82 = vector.broadcast %cst_40 : f32 to vector<128x128xf32>
    %83 = arith.mulf %82, %79 : vector<128x128xf32>
    %84 = arith.select %81, %79, %83 : vector<128x128xi1>, vector<128x128xf32>
    %c0_41 = arith.constant 0 : index
    %c0_42 = arith.constant 0 : index
    %85 = vector.load %arg19[%c0_41, %c0_42] : memref<128x128xf32, #tpu.memory_space<vmem>>, vector<128x128xf32>
    tpu.vector_store %arg19[%c0_41, %c0_42], %84 {strides = array<i32>} : memref<128x128xf32, #tpu.memory_space<vmem>>, vector<128x128xf32>,
    %c1_i32 = arith.constant 1 : i32
    %86 = arith.cmpi eq, %arg1, %c1_i32 : i32
    %87 = arith.extui %86 : i1 to i32
    %c0_i32_43 = arith.constant 0 : i32
    %88 = arith.cmpi ne, %87, %c0_i32_43 : i32
    scf.if %88 {
      %c0_44 = arith.constant 0 : index
      %c0_45 = arith.constant 0 : index
      %89 = vector.load %arg16[%c0_44, %c0_45] : memref<128x128xf32, #tpu.memory_space<vmem>>, vector<128x128xf32>
      %cst_46 = arith.constant dense<0.000000e+00> : vector<128x128xf32>
      %90 = tpu.matmul %84, %89, %cst_46 {dimension_numbers = #tpu.dot_dimension_numbers<[1], [0], [0], [1], [0, 0, 1, 1], [], []>} : vector<128x128xf32>, vector<128x128xf32>, vector<128x128xf32> -> vector<128x128xf32>
      %c0_47 = arith.constant 0 : index
      %c0_48 = arith.constant 0 : index
      %91 = vector.load %arg17[%c0_47, %c0_48] : memref<1x128xf32, #tpu.memory_space<vmem>>, vector<1x128xf32>
      %92 = vector.broadcast %91 : vector<1x128xf32> to vector<128x128xf32>
      %93 = arith.addf %90, %92 : vector<128x128xf32>
      %c0_49 = arith.constant 0 : index
      %c0_50 = arith.constant 0 : index
      %94 = vector.load %arg18[%c0_49, %c0_50] : memref<128x128xf32, #tpu.memory_space<vmem>>, vector<128x128xf32>
      tpu.vector_store %arg18[%c0_49, %c0_50], %93 {strides = array<i32>} : memref<128x128xf32, #tpu.memory_space<vmem>>, vector<128x128xf32>,
    } else {
    }
    return
  }
  func.func @transform_0(%arg0: i32, %arg1: i32) -> i32 {
    %c0_i32 = arith.constant 0 : i32
    %c0_i32_0 = arith.constant 0 : i32
    return %c0_i32 : i32
  }
  func.func @transform_1(%arg0: i32, %arg1: i32) -> (i32, i32) {
    %c0_i32 = arith.constant 0 : i32
    %c0_i32_0 = arith.constant 0 : i32
    return %arg0, %c0_i32 : i32, i32
  }
  func.func @transform_2(%arg0: i32, %arg1: i32) -> (i32, i32) {
    %c0_i32 = arith.constant 0 : i32
    %c0_i32_0 = arith.constant 0 : i32
    %c0_i32_1 = arith.constant 0 : i32
    return %c0_i32, %c0_i32_0 : i32, i32
  }
  func.func @transform_3(%arg0: i32, %arg1: i32) -> (i32, i32) {
    %c0_i32 = arith.constant 0 : i32
    %c0_i32_0 = arith.constant 0 : i32
    %c0_i32_1 = arith.constant 0 : i32
    return %c0_i32, %c0_i32_0 : i32, i32
  }
  func.func @transform_4(%arg0: i32, %arg1: i32) -> (i32, i32) {
    %c0_i32 = arith.constant 0 : i32
    %c0_i32_0 = arith.constant 0 : i32
    %c0_i32_1 = arith.constant 0 : i32
    return %c0_i32, %c0_i32_0 : i32, i32
  }
  func.func @transform_5(%arg0: i32, %arg1: i32) -> (i32, i32) {
    %c0_i32 = arith.constant 0 : i32
    %c0_i32_0 = arith.constant 0 : i32
    %c0_i32_1 = arith.constant 0 : i32
    return %c0_i32, %c0_i32_0 : i32, i32
  }
  func.func @transform_6(%arg0: i32, %arg1: i32) -> (i32, i32, i32) {
    %c0_i32 = arith.constant 0 : i32
    %c0_i32_0 = arith.constant 0 : i32
    %c0_i32_1 = arith.constant 0 : i32
    return %arg1, %c0_i32, %c0_i32_0 : i32, i32, i32
  }
  func.func @transform_7(%arg0: i32, %arg1: i32) -> (i32, i32, i32) {
    %c0_i32 = arith.constant 0 : i32
    %c0_i32_0 = arith.constant 0 : i32
    %c0_i32_1 = arith.constant 0 : i32
    return %arg1, %c0_i32, %c0_i32_0 : i32, i32, i32
  }
  func.func @transform_8(%arg0: i32, %arg1: i32) -> (i32, i32, i32) {
    %c0_i32 = arith.constant 0 : i32
    %c0_i32_0 = arith.constant 0 : i32
    %c0_i32_1 = arith.constant 0 : i32
    return %arg1, %c0_i32, %c0_i32_0 : i32, i32, i32
  }
  func.func @transform_9(%arg0: i32, %arg1: i32) -> (i32, i32, i32) {
    %c0_i32 = arith.constant 0 : i32
    %c0_i32_0 = arith.constant 0 : i32
    %c0_i32_1 = arith.constant 0 : i32
    return %arg1, %c0_i32, %c0_i32_0 : i32, i32, i32
  }
  func.func @transform_10(%arg0: i32, %arg1: i32) -> (i32, i32, i32) {
    %c0_i32 = arith.constant 0 : i32
    %c0_i32_0 = arith.constant 0 : i32
    %c0_i32_1 = arith.constant 0 : i32
    return %arg1, %c0_i32, %c0_i32_0 : i32, i32, i32
  }
  func.func @transform_11(%arg0: i32, %arg1: i32) -> (i32, i32, i32) {
    %c0_i32 = arith.constant 0 : i32
    %c0_i32_0 = arith.constant 0 : i32
    %c0_i32_1 = arith.constant 0 : i32
    return %arg1, %c0_i32, %c0_i32_0 : i32, i32, i32
  }
  func.func @transform_12(%arg0: i32, %arg1: i32) -> (i32, i32, i32) {
    %c0_i32 = arith.constant 0 : i32
    %c0_i32_0 = arith.constant 0 : i32
    %c0_i32_1 = arith.constant 0 : i32
    return %arg1, %c0_i32, %c0_i32_0 : i32, i32, i32
  }
  func.func @transform_13(%arg0: i32, %arg1: i32) -> (i32, i32, i32) {
    %c0_i32 = arith.constant 0 : i32
    %c0_i32_0 = arith.constant 0 : i32
    %c0_i32_1 = arith.constant 0 : i32
    return %arg1, %c0_i32, %c0_i32_0 : i32, i32, i32
  }
  func.func @transform_14(%arg0: i32, %arg1: i32) -> (i32, i32) {
    %c0_i32 = arith.constant 0 : i32
    %c0_i32_0 = arith.constant 0 : i32
    %c0_i32_1 = arith.constant 0 : i32
    return %c0_i32, %c0_i32_0 : i32, i32
  }
  func.func @transform_15(%arg0: i32, %arg1: i32) -> (i32, i32) {
    %c0_i32 = arith.constant 0 : i32
    %c0_i32_0 = arith.constant 0 : i32
    %c0_i32_1 = arith.constant 0 : i32
    return %c0_i32, %c0_i32_0 : i32, i32
  }
  func.func @transform_16(%arg0: i32, %arg1: i32) -> (i32, i32) {
    %c0_i32 = arith.constant 0 : i32
    %c0_i32_0 = arith.constant 0 : i32
    return %arg0, %c0_i32 : i32, i32
  }
}

</mosaic_0001>

<llo_original>
// kernel: tpu_custom_call.1
$region0: #{tpu_custom_call.1}
  #allocation0 [shape = 'u32[]', space=smem, size = 0x4, offset = 0x4, fixed_abs, tag = 'smem constant byte address 0x4 - core index']
  #allocation1 [shape = 'u32[144,128]{1,0:T(1,128)}', space=vmem, size = 0x12000, scoped, tag = 'internal scratch']
  #allocation2 [shape = 'f32[128,128]{1,0:T(8,128)}', space=vmem, size = 0x10000, scoped, tag = 'scratch operand']
  %s0 = inlined_call_operand.hbm [shape: f32[2], index: 0, kind: input, shape index: {}]
  %s1 = inlined_call_operand.hbm [shape: f32[256,128], index: 1, kind: input, shape index: {}]
  %s2 = inlined_call_operand.hbm [shape: f32[128,128], index: 2, kind: input, shape index: {}]
  %s3 = inlined_call_operand.vmem [shape: f32[1,128], index: 3, kind: input, shape index: {}]
  %s4 = inlined_call_operand.vmem [shape: f32[1,128], index: 4, kind: input, shape index: {}]
  %s5 = inlined_call_operand.vmem [shape: f32[1,128], index: 5, kind: input, shape index: {}]
  %s6 = inlined_call_operand.hbm [shape: f32[2,128,128], index: 6, kind: input, shape index: {}]
  %s7 = inlined_call_operand.vmem [shape: f32[2,1,128], index: 7, kind: input, shape index: {}]
  %s8 = inlined_call_operand.vmem [shape: f32[2,1,128], index: 8, kind: input, shape index: {}]
  %s9 = inlined_call_operand.vmem [shape: f32[2,1,128], index: 9, kind: input, shape index: {}]
  %s10 = inlined_call_operand.hbm [shape: f32[2,128,128], index: 10, kind: input, shape index: {}]
  %s11 = inlined_call_operand.vmem [shape: f32[2,1,128], index: 11, kind: input, shape index: {}]
  %s12 = inlined_call_operand.vmem [shape: f32[2,1,128], index: 12, kind: input, shape index: {}]
  %s13 = inlined_call_operand.vmem [shape: f32[2,1,128], index: 13, kind: input, shape index: {}]
  %s14 = inlined_call_operand.hbm [shape: f32[128,128], index: 14, kind: input, shape index: {}]
  %s15 = inlined_call_operand.vmem [shape: f32[1,128], index: 15, kind: input, shape index: {}]
  %s16 = inlined_call_operand.hbm [shape: f32[256,128], index: 16, kind: output, shape index: {}]
  %s17 = sld [smem:[#allocation0]]
  $region129: #{tpu_custom_call.1} parent=0
    _
  %s19 = ssub.s32 1, %s17
  %s20 = scalar_select 0, %s19, %s17
  $region1: #{tpu_custom_call.1} parent=0
    #allocation3 [shape = 'u8[512]{0}', space=smem, size = 0x200, scoped, tag = 'input window, operand 0, single buffered']
    #allocation4 [shape = 's32[2]{0}', space=sflag, size = 0x8, scoped, tag = 'scoped memory for tpu_custom_call.1']
    #allocation5 [shape = 's32[2]{0}', space=sflag, size = 0x8, scoped, tag = 'scoped memory for tpu_custom_call.1']
    #allocation6 [shape = 's32[2]{0}', space=sflag, size = 0x8, scoped, tag = 'scoped memory for tpu_custom_call.1']
    #allocation7 [shape = 'u8[131072]{0}', space=vmem, size = 0x20000, scoped, tag = 'input window, operand 1']
    #allocation8 [shape = 'u8[65536]{0}', space=vmem, size = 0x10000, scoped, tag = 'input window, operand 2, single buffered']
    #allocation9 [shape = 's32[1]{0}', space=sflag, size = 0x4, scoped, tag = 'scoped memory for tpu_custom_call.1']
    #allocation10 [shape = 'u8[131072]{0}', space=vmem, size = 0x20000, scoped, tag = 'input window, operand 6']
    #allocation11 [shape = 'u8[131072]{0}', space=vmem, size = 0x20000, scoped, tag = 'input window, operand 10']
    #allocation12 [shape = 'u8[65536]{0}', space=vmem, size = 0x10000, scoped, tag = 'input window, operand 14, single buffered']
    #allocation13 [shape = 'u8[131072]{0}', space=vmem, size = 0x20000, scoped, tag = 'output window, operand 0']
    %21 = vsyncpa [#allocation6], 0
    %22 = vsyncpa [#allocation4], 0
    %s23 = scalar_lea.sflag [#allocation4], 1
    %24 = vsyncpa %s23, 0
    %25 = vsyncpa [#allocation9], 0
    %26 = vsyncpa [#allocation5], 0
    %s27 = scalar_lea.sflag [#allocation5], 1
    %28 = vsyncpa %s27, 0
    loop: start=0, step=1, limit=6
    $region2: #{tpu_custom_call.1} parent=1 // loop_pre_header
      _
    $region3: #{tpu_custom_call.1} parent=1 // loop_header
      %s30 = sphi 0, %s34
      %p31 = scmp.ge.s32.totalorder %s30, 6
      %s37 = sphi 0, %s49
      %s38 = sphi 0, %s45
      %s39 = sphi 0, %s37
      %s40 = sphi 0, %s38
      %s41 = sphi 0, %s39
      %s42 = sphi 0, %s40
      %s50 = sphi 0, %s50
      %s52 = sphi 0, %s50
      %s53 = sphi 0, %s52
      %s67 = sphi 0, %s53
      %s73 = sphi 0, %s75
      %s76 = sphi 0, %s73
      %s77 = sphi 0, %s76
      %s93 = sphi 0, %s77
      %s97 = sphi 0, %s97
      %s99 = sphi 0, %s97
      %s100 = sphi 0, %s99
      %s114 = sphi 0, %s100
      %s118 = sphi 0, %s118
      %s120 = sphi 0, %s118
      %s121 = sphi 0, %s120
      %s135 = sphi 0, %s121
      %s139 = sphi 0, %s139
      %s141 = sphi 0, %s139
      %s142 = sphi 0, %s141
      %s156 = sphi 0, %s142
      %s160 = sphi 0, %s160
      %s162 = sphi 0, %s160
      %s163 = sphi 0, %s162
      %s177 = sphi 0, %s163
      %s183 = sphi 0, %s185
      %s186 = sphi 0, %s183
      %s187 = sphi 0, %s186
      %s203 = sphi 0, %s187
      %s209 = sphi 0, %s211
      %s212 = sphi 0, %s209
      %s213 = sphi 0, %s212
      %s229 = sphi 0, %s213
      %s235 = sphi 0, %s237
      %s238 = sphi 0, %s235
      %s239 = sphi 0, %s238
      %s255 = sphi 0, %s239
      %s261 = sphi 0, %s263
      %s264 = sphi 0, %s261
      %s265 = sphi 0, %s264
      %s281 = sphi 0, %s265
      %s287 = sphi 0, %s289
      %s290 = sphi 0, %s287
      %s291 = sphi 0, %s290
      %s307 = sphi 0, %s291
      %s313 = sphi 0, %s315
      %s316 = sphi 0, %s313
      %s317 = sphi 0, %s316
      %s333 = sphi 0, %s317
      %s339 = sphi 0, %s341
      %s342 = sphi 0, %s339
      %s343 = sphi 0, %s342
      %s359 = sphi 0, %s343
      %s365 = sphi 0, %s367
      %s368 = sphi 0, %s365
      %s369 = sphi 0, %s368
      %s385 = sphi 0, %s369
      %s389 = sphi 0, %s389
      %s391 = sphi 0, %s389
      %s392 = sphi 0, %s391
      %s406 = sphi 0, %s392
      %s410 = sphi 0, %s410
      %s412 = sphi 0, %s410
      %s413 = sphi 0, %s412
      %s427 = sphi 0, %s413
      %s433 = sphi 0, %s435
      %s436 = sphi 0, %s433
      %s437 = sphi 0, %s436
      %s453 = sphi 0, %s437
    $region4: #{tpu_custom_call.1} parent=1 // loop_header_branch
      %33 = sbr.rel (%p31) target = $region8
    $region5: #{tpu_custom_call.1} parent=1 // loop_body
      %s35 = ssub.s32 %s30, 1
      %s36 = ssub.s32 %s30, 2
      %s43 = sadd.s32 1, %s38
      %p44 = scmp.ge.s32.totalorder %s43, 2
      %s45 = scalar_select %p44, 0, %s43
      %s46 = sadd.s32 1, %s37
      %s47 = scalar_select %p44, %s46, %s37
      %p48 = scmp.ge.s32.totalorder %s47, 2
      %s49 = scalar_select %p48, 0, %s47
      %s51 = sadd.s32 %s50, 1
      %p54 = scmp.eq.s32.totalorder %s30, 3
      %p55 = scmp.ne.s32.totalorder %s50, %s52
      %p56 = scmp.eq.s32.totalorder %s30, 0
      %p57 = por %p55, %p56
      %p58 = scmp.ne.s32.totalorder %s50, %s52
      %p59 = scmp.eq.s32.totalorder %s35, 3
      %p60 = por %p58, %p59
      %p61 = scmp.ne.s32.totalorder %s52, %s53
      %p62 = scmp.eq.s32.totalorder %s35, 0
      %p63 = por %p61, %p62
      %p64 = scmp.ne.s32.totalorder %s52, %s53
      %p65 = scmp.eq.s32.totalorder %s36, 3
      %p66 = por %p64, %p65
      %p68 = scmp.ne.s32.totalorder %s53, %s67
      %p69 = scmp.eq.s32.totalorder %s36, 0
      %p70 = por %p68, %p69
      %s71 = ssub.s32 %s37, %s49
      %p72 = scmp.eq.s32.totalorder %s71, 0
      %s74 = sadd.s32 %s73, 1
      %s75 = scalar_select %p72, %s73, %s74
      %p78 = pneg %p72
      %p79 = scmp.eq.s32.totalorder %s30, 3
      %p80 = por %p78, %p79
      %p81 = scmp.ne.s32.totalorder %s73, %s76
      %p82 = scmp.eq.s32.totalorder %s30, 0
      %p83 = por %p81, %p82
      %p84 = scmp.ne.s32.totalorder %s73, %s76
      %p85 = scmp.eq.s32.totalorder %s35, 3
      %p86 = por %p84, %p85
      %p87 = scmp.ne.s32.totalorder %s76, %s77
      %p88 = scmp.eq.s32.totalorder %s35, 0
      %p89 = por %p87, %p88
      %p90 = scmp.ne.s32.totalorder %s76, %s77
      %p91 = scmp.eq.s32.totalorder %s36, 3
      %p92 = por %p90, %p91
      %p94 = scmp.ne.s32.totalorder %s77, %s93
      %p95 = scmp.eq.s32.totalorder %s36, 0
      %p96 = por %p94, %p95
      %s98 = sadd.s32 %s97, 1
      %p101 = scmp.eq.s32.totalorder %s30, 3
      %p102 = scmp.ne.s32.totalorder %s97, %s99
      %p103 = scmp.eq.s32.totalorder %s30, 0
      %p104 = por %p102, %p103
      %p105 = scmp.ne.s32.totalorder %s97, %s99
      %p106 = scmp.eq.s32.totalorder %s35, 3
      %p107 = por %p105, %p106
      %p108 = scmp.ne.s32.totalorder %s99, %s100
      %p109 = scmp.eq.s32.totalorder %s35, 0
      %p110 = por %p108, %p109
      %p111 = scmp.ne.s32.totalorder %s99, %s100
      %p112 = scmp.eq.s32.totalorder %s36, 3
      %p113 = por %p111, %p112
      %p115 = scmp.ne.s32.totalorder %s100, %s114
      %p116 = scmp.eq.s32.totalorder %s36, 0
      %p117 = por %p115, %p116
      %s119 = sadd.s32 %s118, 1
      %p122 = scmp.eq.s32.totalorder %s30, 3
      %p123 = scmp.ne.s32.totalorder %s118, %s120
      %p124 = scmp.eq.s32.totalorder %s30, 0
      %p125 = por %p123, %p124
      %p126 = scmp.ne.s32.totalorder %s118, %s120
      %p127 = scmp.eq.s32.totalorder %s35, 3
      %p128 = por %p126, %p127
      %p129 = scmp.ne.s32.totalorder %s120, %s121
      %p130 = scmp.eq.s32.totalorder %s35, 0
      %p131 = por %p129, %p130
      %p132 = scmp.ne.s32.totalorder %s120, %s121
      %p133 = scmp.eq.s32.totalorder %s36, 3
      %p134 = por %p132, %p133
      %p136 = scmp.ne.s32.totalorder %s121, %s135
      %p137 = scmp.eq.s32.totalorder %s36, 0
      %p138 = por %p136, %p137
      %s140 = sadd.s32 %s139, 1
      %p143 = scmp.eq.s32.totalorder %s30, 3
      %p144 = scmp.ne.s32.totalorder %s139, %s141
      %p145 = scmp.eq.s32.totalorder %s30, 0
      %p146 = por %p144, %p145
      %p147 = scmp.ne.s32.totalorder %s139, %s141
      %p148 = scmp.eq.s32.totalorder %s35, 3
      %p149 = por %p147, %p148
      %p150 = scmp.ne.s32.totalorder %s141, %s142
      %p151 = scmp.eq.s32.totalorder %s35, 0
      %p152 = por %p150, %p151
      %p153 = scmp.ne.s32.totalorder %s141, %s142
      %p154 = scmp.eq.s32.totalorder %s36, 3
      %p155 = por %p153, %p154
      %p157 = scmp.ne.s32.totalorder %s142, %s156
      %p158 = scmp.eq.s32.totalorder %s36, 0
      %p159 = por %p157, %p158
      %s161 = sadd.s32 %s160, 1
      %p164 = scmp.eq.s32.totalorder %s30, 3
      %p165 = scmp.ne.s32.totalorder %s160, %s162
      %p166 = scmp.eq.s32.totalorder %s30, 0
      %p167 = por %p165, %p166
      %p168 = scmp.ne.s32.totalorder %s160, %s162
      %p169 = scmp.eq.s32.totalorder %s35, 3
      %p170 = por %p168, %p169
      %p171 = scmp.ne.s32.totalorder %s162, %s163
      %p172 = scmp.eq.s32.totalorder %s35, 0
      %p173 = por %p171, %p172
      %p174 = scmp.ne.s32.totalorder %s162, %s163
      %p175 = scmp.eq.s32.totalorder %s36, 3
      %p176 = por %p174, %p175
      %p178 = scmp.ne.s32.totalorder %s163, %s177
      %p179 = scmp.eq.s32.totalorder %s36, 0
      %p180 = por %p178, %p179
      %s181 = ssub.s32 %s38, %s45
      %p182 = scmp.eq.s32.totalorder %s181, 0
      %s184 = sadd.s32 %s183, 1
      %s185 = scalar_select %p182, %s183, %s184
      %p188 = pneg %p182
      %p189 = scmp.eq.s32.totalorder %s30, 3
      %p190 = por %p188, %p189
      %p191 = scmp.ne.s32.totalorder %s183, %s186
      %p192 = scmp.eq.s32.totalorder %s30, 0
      %p193 = por %p191, %p192
      %p194 = scmp.ne.s32.totalorder %s183, %s186
      %p195 = scmp.eq.s32.totalorder %s35, 3
      %p196 = por %p194, %p195
      %p197 = scmp.ne.s32.totalorder %s186, %s187
      %p198 = scmp.eq.s32.totalorder %s35, 0
      %p199 = por %p197, %p198
      %p200 = scmp.ne.s32.totalorder %s186, %s187
      %p201 = scmp.eq.s32.totalorder %s36, 3
      %p202 = por %p200, %p201
      %p204 = scmp.ne.s32.totalorder %s187, %s203
      %p205 = scmp.eq.s32.totalorder %s36, 0
      %p206 = por %p204, %p205
      %s207 = ssub.s32 %s38, %s45
      %p208 = scmp.eq.s32.totalorder %s207, 0
      %s210 = sadd.s32 %s209, 1
      %s211 = scalar_select %p208, %s209, %s210
      %p214 = pneg %p208
      %p215 = scmp.eq.s32.totalorder %s30, 3
      %p216 = por %p214, %p215
      %p217 = scmp.ne.s32.totalorder %s209, %s212
      %p218 = scmp.eq.s32.totalorder %s30, 0
      %p219 = por %p217, %p218
      %p220 = scmp.ne.s32.totalorder %s209, %s212
      %p221 = scmp.eq.s32.totalorder %s35, 3
      %p222 = por %p220, %p221
      %p223 = scmp.ne.s32.totalorder %s212, %s213
      %p224 = scmp.eq.s32.totalorder %s35, 0
      %p225 = por %p223, %p224
      %p226 = scmp.ne.s32.totalorder %s212, %s213
      %p227 = scmp.eq.s32.totalorder %s36, 3
      %p228 = por %p226, %p227
      %p230 = scmp.ne.s32.totalorder %s213, %s229
      %p231 = scmp.eq.s32.totalorder %s36, 0
      %p232 = por %p230, %p231
      %s233 = ssub.s32 %s38, %s45
      %p234 = scmp.eq.s32.totalorder %s233, 0
      %s236 = sadd.s32 %s235, 1
      %s237 = scalar_select %p234, %s235, %s236
      %p240 = pneg %p234
      %p241 = scmp.eq.s32.totalorder %s30, 3
      %p242 = por %p240, %p241
      %p243 = scmp.ne.s32.totalorder %s235, %s238
      %p244 = scmp.eq.s32.totalorder %s30, 0
      %p245 = por %p243, %p244
      %p246 = scmp.ne.s32.totalorder %s235, %s238
      %p247 = scmp.eq.s32.totalorder %s35, 3
      %p248 = por %p246, %p247
      %p249 = scmp.ne.s32.totalorder %s238, %s239
      %p250 = scmp.eq.s32.totalorder %s35, 0
      %p251 = por %p249, %p250
      %p252 = scmp.ne.s32.totalorder %s238, %s239
      %p253 = scmp.eq.s32.totalorder %s36, 3
      %p254 = por %p252, %p253
      %p256 = scmp.ne.s32.totalorder %s239, %s255
      %p257 = scmp.eq.s32.totalorder %s36, 0
      %p258 = por %p256, %p257
      %s259 = ssub.s32 %s38, %s45
      %p260 = scmp.eq.s32.totalorder %s259, 0
      %s262 = sadd.s32 %s261, 1
      %s263 = scalar_select %p260, %s261, %s262
      %p266 = pneg %p260
      %p267 = scmp.eq.s32.totalorder %s30, 3
      %p268 = por %p266, %p267
      %p269 = scmp.ne.s32.totalorder %s261, %s264
      %p270 = scmp.eq.s32.totalorder %s30, 0
      %p271 = por %p269, %p270
      %p272 = scmp.ne.s32.totalorder %s261, %s264
      %p273 = scmp.eq.s32.totalorder %s35, 3
      %p274 = por %p272, %p273
      %p275 = scmp.ne.s32.totalorder %s264, %s265
      %p276 = scmp.eq.s32.totalorder %s35, 0
      %p277 = por %p275, %p276
      %p278 = scmp.ne.s32.totalorder %s264, %s265
      %p279 = scmp.eq.s32.totalorder %s36, 3
      %p280 = por %p278, %p279
      %p282 = scmp.ne.s32.totalorder %s265, %s281
      %p283 = scmp.eq.s32.totalorder %s36, 0
      %p284 = por %p282, %p283
      %s285 = ssub.s32 %s38, %s45
      %p286 = scmp.eq.s32.totalorder %s285, 0
      %s288 = sadd.s32 %s287, 1
      %s289 = scalar_select %p286, %s287, %s288
      %p292 = pneg %p286
      %p293 = scmp.eq.s32.totalorder %s30, 3
      %p294 = por %p292, %p293
      %p295 = scmp.ne.s32.totalorder %s287, %s290
      %p296 = scmp.eq.s32.totalorder %s30, 0
      %p297 = por %p295, %p296
      %p298 = scmp.ne.s32.totalorder %s287, %s290
      %p299 = scmp.eq.s32.totalorder %s35, 3
      %p300 = por %p298, %p299
      %p301 = scmp.ne.s32.totalorder %s290, %s291
      %p302 = scmp.eq.s32.totalorder %s35, 0
      %p303 = por %p301, %p302
      %p304 = scmp.ne.s32.totalorder %s290, %s291
      %p305 = scmp.eq.s32.totalorder %s36, 3
      %p306 = por %p304, %p305
      %p308 = scmp.ne.s32.totalorder %s291, %s307
      %p309 = scmp.eq.s32.totalorder %s36, 0
      %p310 = por %p308, %p309
      %s311 = ssub.s32 %s38, %s45
      %p312 = scmp.eq.s32.totalorder %s311, 0
      %s314 = sadd.s32 %s313, 1
      %s315 = scalar_select %p312, %s313, %s314
      %p318 = pneg %p312
      %p319 = scmp.eq.s32.totalorder %s30, 3
      %p320 = por %p318, %p319
      %p321 = scmp.ne.s32.totalorder %s313, %s316
      %p322 = scmp.eq.s32.totalorder %s30, 0
      %p323 = por %p321, %p322
      %p324 = scmp.ne.s32.totalorder %s313, %s316
      %p325 = scmp.eq.s32.totalorder %s35, 3
      %p326 = por %p324, %p325
      %p327 = scmp.ne.s32.totalorder %s316, %s317
      %p328 = scmp.eq.s32.totalorder %s35, 0
      %p329 = por %p327, %p328
      %p330 = scmp.ne.s32.totalorder %s316, %s317
      %p331 = scmp.eq.s32.totalorder %s36, 3
      %p332 = por %p330, %p331
      %p334 = scmp.ne.s32.totalorder %s317, %s333
      %p335 = scmp.eq.s32.totalorder %s36, 0
      %p336 = por %p334, %p335
      %s337 = ssub.s32 %s38, %s45
      %p338 = scmp.eq.s32.totalorder %s337, 0
      %s340 = sadd.s32 %s339, 1
      %s341 = scalar_select %p338, %s339, %s340
      %p344 = pneg %p338
      %p345 = scmp.eq.s32.totalorder %s30, 3
      %p346 = por %p344, %p345
      %p347 = scmp.ne.s32.totalorder %s339, %s342
      %p348 = scmp.eq.s32.totalorder %s30, 0
      %p349 = por %p347, %p348
      %p350 = scmp.ne.s32.totalorder %s339, %s342
      %p351 = scmp.eq.s32.totalorder %s35, 3
      %p352 = por %p350, %p351
      %p353 = scmp.ne.s32.totalorder %s342, %s343
      %p354 = scmp.eq.s32.totalorder %s35, 0
      %p355 = por %p353, %p354
      %p356 = scmp.ne.s32.totalorder %s342, %s343
      %p357 = scmp.eq.s32.totalorder %s36, 3
      %p358 = por %p356, %p357
      %p360 = scmp.ne.s32.totalorder %s343, %s359
      %p361 = scmp.eq.s32.totalorder %s36, 0
      %p362 = por %p360, %p361
      %s363 = ssub.s32 %s38, %s45
      %p364 = scmp.eq.s32.totalorder %s363, 0
      %s366 = sadd.s32 %s365, 1
      %s367 = scalar_select %p364, %s365, %s366
      %p370 = pneg %p364
      %p371 = scmp.eq.s32.totalorder %s30, 3
      %p372 = por %p370, %p371
      %p373 = scmp.ne.s32.totalorder %s365, %s368
      %p374 = scmp.eq.s32.totalorder %s30, 0
      %p375 = por %p373, %p374
      %p376 = scmp.ne.s32.totalorder %s365, %s368
      %p377 = scmp.eq.s32.totalorder %s35, 3
      %p378 = por %p376, %p377
      %p379 = scmp.ne.s32.totalorder %s368, %s369
      %p380 = scmp.eq.s32.totalorder %s35, 0
      %p381 = por %p379, %p380
      %p382 = scmp.ne.s32.totalorder %s368, %s369
      %p383 = scmp.eq.s32.totalorder %s36, 3
      %p384 = por %p382, %p383
      %p386 = scmp.ne.s32.totalorder %s369, %s385
      %p387 = scmp.eq.s32.totalorder %s36, 0
      %p388 = por %p386, %p387
      %s390 = sadd.s32 %s389, 1
      %p393 = scmp.eq.s32.totalorder %s30, 3
      %p394 = scmp.ne.s32.totalorder %s389, %s391
      %p395 = scmp.eq.s32.totalorder %s30, 0
      %p396 = por %p394, %p395
      %p397 = scmp.ne.s32.totalorder %s389, %s391
      %p398 = scmp.eq.s32.totalorder %s35, 3
      %p399 = por %p397, %p398
      %p400 = scmp.ne.s32.totalorder %s391, %s392
      %p401 = scmp.eq.s32.totalorder %s35, 0
      %p402 = por %p400, %p401
      %p403 = scmp.ne.s32.totalorder %s391, %s392
      %p404 = scmp.eq.s32.totalorder %s36, 3
      %p405 = por %p403, %p404
      %p407 = scmp.ne.s32.totalorder %s392, %s406
      %p408 = scmp.eq.s32.totalorder %s36, 0
      %p409 = por %p407, %p408
      %s411 = sadd.s32 %s410, 1
      %p414 = scmp.eq.s32.totalorder %s30, 3
      %p415 = scmp.ne.s32.totalorder %s410, %s412
      %p416 = scmp.eq.s32.totalorder %s30, 0
      %p417 = por %p415, %p416
      %p418 = scmp.ne.s32.totalorder %s410, %s412
      %p419 = scmp.eq.s32.totalorder %s35, 3
      %p420 = por %p418, %p419
      %p421 = scmp.ne.s32.totalorder %s412, %s413
      %p422 = scmp.eq.s32.totalorder %s35, 0
      %p423 = por %p421, %p422
      %p424 = scmp.ne.s32.totalorder %s412, %s413
      %p425 = scmp.eq.s32.totalorder %s36, 3
      %p426 = por %p424, %p425
      %p428 = scmp.ne.s32.totalorder %s413, %s427
      %p429 = scmp.eq.s32.totalorder %s36, 0
      %p430 = por %p428, %p429
      %s431 = ssub.s32 %s37, %s49
      %p432 = scmp.eq.s32.totalorder %s431, 0
      %s434 = sadd.s32 %s433, 1
      %s435 = scalar_select %p432, %s433, %s434
      %p438 = pneg %p432
      %p439 = scmp.eq.s32.totalorder %s30, 3
      %p440 = por %p438, %p439
      %p441 = scmp.ne.s32.totalorder %s433, %s436
      %p442 = scmp.eq.s32.totalorder %s30, 0
      %p443 = por %p441, %p442
      %p444 = scmp.ne.s32.totalorder %s433, %s436
      %p445 = scmp.eq.s32.totalorder %s35, 3
      %p446 = por %p444, %p445
      %p447 = scmp.ne.s32.totalorder %s436, %s437
      %p448 = scmp.eq.s32.totalorder %s35, 0
      %p449 = por %p447, %p448
      %p450 = scmp.ne.s32.totalorder %s436, %s437
      %p451 = scmp.eq.s32.totalorder %s36, 3
      %p452 = por %p450, %p451
      %p454 = scmp.ne.s32.totalorder %s437, %s453
      %p455 = scmp.eq.s32.totalorder %s36, 0
      %p456 = por %p454, %p455
      %p457 = scmp.le.s32.totalorder 1, %s30
      %p458 = scmp.lt.s32.totalorder %s30, 5
      %p459 = pnand %p457, %p458
      %p460 = pneg %p459
      // Predicated region
      $region9: #{tpu_custom_call.1} parent=5 // pred_check
        _
      $region10: #{tpu_custom_call.1} parent=5 // pred_check_branch
        %462 = sbr.rel (%p459) target = $region12
      $region11: #{tpu_custom_call.1} parent=5 // pred_region
        %s463 = ssub.s32 %s30, 1
        // Predicated region
        $region13: #{tpu_custom_call.1} parent=11 // pred_check
          %p464 = pneg %p63
        $region14: #{tpu_custom_call.1} parent=11 // pred_check_branch
          %466 = sbr.rel (%p464) target = $region16
        $region15: #{tpu_custom_call.1} parent=11 // pred_region
          %s468 = ssub.s32 16, 16
          %469 = vsyncadd [#allocation6], %s468
          %472 = dma.hbm_to_smem %s0, 16, [#allocation3], [#allocation6]
        $region16: #{tpu_custom_call.1} parent=11 // pred_fallthru
          _
        // Predicated region
        $region17: #{tpu_custom_call.1} parent=11 // pred_check
          %p473 = pneg %p110
        $region18: #{tpu_custom_call.1} parent=11 // pred_check_branch
          %475 = sbr.rel (%p473) target = $region20
        $region19: #{tpu_custom_call.1} parent=11 // pred_region
          %s477 = ssub.s32 2048, 2048
          %478 = vsyncadd [#allocation9], %s477
          %s479 = sshll.u32 [#allocation8], 4
          %s480 = int_to_ptr.vmem [resolvable:$true] %s479
          %485 = dma.hbm_to_vmem [thread:$0]  %s2, 2048, %s480, [#allocation9], 128, 128, 8
        $region20: #{tpu_custom_call.1} parent=11 // pred_fallthru
          _
        // Predicated region
        $region21: #{tpu_custom_call.1} parent=11 // pred_check
          %p486 = pneg %p131
        $region22: #{tpu_custom_call.1} parent=11 // pred_check_branch
          %488 = sbr.rel (%p486) target = $region24
        $region23: #{tpu_custom_call.1} parent=11 // pred_region
          _
        $region24: #{tpu_custom_call.1} parent=11 // pred_fallthru
          _
        // Predicated region
        $region25: #{tpu_custom_call.1} parent=11 // pred_check
          %p489 = pneg %p152
        $region26: #{tpu_custom_call.1} parent=11 // pred_check_branch
          %491 = sbr.rel (%p489) target = $region28
        $region27: #{tpu_custom_call.1} parent=11 // pred_region
          _
        $region28: #{tpu_custom_call.1} parent=11 // pred_fallthru
          _
        // Predicated region
        $region29: #{tpu_custom_call.1} parent=11 // pred_check
          %p492 = pneg %p173
        $region30: #{tpu_custom_call.1} parent=11 // pred_check_branch
          %494 = sbr.rel (%p492) target = $region32
        $region31: #{tpu_custom_call.1} parent=11 // pred_region
          _
        $region32: #{tpu_custom_call.1} parent=11 // pred_fallthru
          _
        // Predicated region
        $region33: #{tpu_custom_call.1} parent=11 // pred_check
          %p495 = pneg %p402
        $region34: #{tpu_custom_call.1} parent=11 // pred_check_branch
          %497 = sbr.rel (%p495) target = $region36
        $region35: #{tpu_custom_call.1} parent=11 // pred_region
          %s499 = ssub.s32 2048, 2048
          %500 = vsyncadd [#allocation9], %s499
          %s501 = sshll.u32 [#allocation12], 4
          %s502 = int_to_ptr.vmem [resolvable:$true] %s501
          %507 = dma.hbm_to_vmem [thread:$0]  %s14, 2048, %s502, [#allocation9], 128, 128, 8
        $region36: #{tpu_custom_call.1} parent=11 // pred_fallthru
          _
        // Predicated region
        $region37: #{tpu_custom_call.1} parent=11 // pred_check
          %p508 = pneg %p423
        $region38: #{tpu_custom_call.1} parent=11 // pred_check_branch
          %510 = sbr.rel (%p508) target = $region40
        $region39: #{tpu_custom_call.1} parent=11 // pred_region
          _
        $region40: #{tpu_custom_call.1} parent=11 // pred_fallthru
          _
      $region12: #{tpu_custom_call.1} parent=5 // pred_fallthru
        _
      %p511 = scmp.lt.s32.totalorder %s30, 4
      // Predicated region
      $region41: #{tpu_custom_call.1} parent=5 // pred_check
        %p512 = pneg %p511
      $region42: #{tpu_custom_call.1} parent=5 // pred_check_branch
        %514 = sbr.rel (%p512) target = $region44
      $region43: #{tpu_custom_call.1} parent=5 // pred_region
        // Predicated region
        $region45: #{tpu_custom_call.1} parent=43 // pred_check
          %p515 = pneg %p83
        $region46: #{tpu_custom_call.1} parent=43 // pred_check_branch
          %517 = sbr.rel (%p515) target = $region48
        $region47: #{tpu_custom_call.1} parent=43 // pred_region
          %s518 = sand.u32 %s30, 1
          %s519 = scalar_lea.sflag [#allocation4], %s518
          %s520 = sand.u32 %s73, 1
          %s521 = smul.addr %s520, 128
          %s522 = scalar_lea.vmem [#allocation7], %s521
          %s523 = smul.u32 16, %s37
          %s525 = ssub.s32 2048, 2048
          %526 = vsyncadd %s519, %s525
          %s527 = smul.addr %s523, 128
          %s528 = scalar_lea.hbm %s1, %s527
          %s529 = sshll.u32 %s522, 4
          %s530 = int_to_ptr.vmem [resolvable:$true] %s529
          %535 = dma.hbm_to_vmem [thread:$0]  %s528, 2048, %s530, %s519, 128, 128, 8
        $region48: #{tpu_custom_call.1} parent=43 // pred_fallthru
          _
        // Predicated region
        $region49: #{tpu_custom_call.1} parent=43 // pred_check
          %p536 = pneg %p193
        $region50: #{tpu_custom_call.1} parent=43 // pred_check_branch
          %538 = sbr.rel (%p536) target = $region52
        $region51: #{tpu_custom_call.1} parent=43 // pred_region
          %s539 = sand.u32 %s30, 1
          %s540 = scalar_lea.sflag [#allocation4], %s539
          %s541 = sand.u32 %s183, 1
          %s542 = smul.addr %s541, 128
          %s543 = scalar_lea.vmem [#allocation10], %s542
          %s545 = ssub.s32 2048, 2048
          %546 = vsyncadd %s540, %s545
          %s547 = smul.addr %s38, 16
          %s548 = smul.addr %s547, 128
          %s549 = scalar_lea.hbm %s6, %s548
          %s550 = sshll.u32 %s543, 4
          %s551 = int_to_ptr.vmem [resolvable:$true] %s550
          %556 = dma.hbm_to_vmem [thread:$0]  %s549, 2048, %s551, %s540, 128, 128, 8
        $region52: #{tpu_custom_call.1} parent=43 // pred_fallthru
          _
        // Predicated region
        $region53: #{tpu_custom_call.1} parent=43 // pred_check
          %p557 = pneg %p219
        $region54: #{tpu_custom_call.1} parent=43 // pred_check_branch
          %559 = sbr.rel (%p557) target = $region56
        $region55: #{tpu_custom_call.1} parent=43 // pred_region
          %p560 = scmp.lt.s32.totalorder %s38, 1
          %s561 = scalar_select %p560, %s38, 1
          %s562 = scalar_lea.vmem %s7, %s561
        $region56: #{tpu_custom_call.1} parent=43 // pred_fallthru
          _
        // Predicated region
        $region57: #{tpu_custom_call.1} parent=43 // pred_check
          %p563 = pneg %p245
        $region58: #{tpu_custom_call.1} parent=43 // pred_check_branch
          %565 = sbr.rel (%p563) target = $region60
        $region59: #{tpu_custom_call.1} parent=43 // pred_region
          %p566 = scmp.lt.s32.totalorder %s38, 1
          %s567 = scalar_select %p566, %s38, 1
          %s568 = scalar_lea.vmem %s8, %s567
        $region60: #{tpu_custom_call.1} parent=43 // pred_fallthru
          _
        // Predicated region
        $region61: #{tpu_custom_call.1} parent=43 // pred_check
          %p569 = pneg %p271
        $region62: #{tpu_custom_call.1} parent=43 // pred_check_branch
          %571 = sbr.rel (%p569) target = $region64
        $region63: #{tpu_custom_call.1} parent=43 // pred_region
          %p572 = scmp.lt.s32.totalorder %s38, 1
          %s573 = scalar_select %p572, %s38, 1
          %s574 = scalar_lea.vmem %s9, %s573
        $region64: #{tpu_custom_call.1} parent=43 // pred_fallthru
          _
        // Predicated region
        $region65: #{tpu_custom_call.1} parent=43 // pred_check
          %p575 = pneg %p297
        $region66: #{tpu_custom_call.1} parent=43 // pred_check_branch
          %577 = sbr.rel (%p575) target = $region68
        $region67: #{tpu_custom_call.1} parent=43 // pred_region
          %s578 = sand.u32 %s30, 1
          %s579 = scalar_lea.sflag [#allocation4], %s578
          %s580 = sand.u32 %s287, 1
          %s581 = smul.addr %s580, 128
          %s582 = scalar_lea.vmem [#allocation11], %s581
          %s584 = ssub.s32 2048, 2048
          %585 = vsyncadd %s579, %s584
          %s586 = smul.addr %s38, 16
          %s587 = smul.addr %s586, 128
          %s588 = scalar_lea.hbm %s10, %s587
          %s589 = sshll.u32 %s582, 4
          %s590 = int_to_ptr.vmem [resolvable:$true] %s589
          %595 = dma.hbm_to_vmem [thread:$0]  %s588, 2048, %s590, %s579, 128, 128, 8
        $region68: #{tpu_custom_call.1} parent=43 // pred_fallthru
          _
        // Predicated region
        $region69: #{tpu_custom_call.1} parent=43 // pred_check
          %p596 = pneg %p323
        $region70: #{tpu_custom_call.1} parent=43 // pred_check_branch
          %598 = sbr.rel (%p596) target = $region72
        $region71: #{tpu_custom_call.1} parent=43 // pred_region
          %p599 = scmp.lt.s32.totalorder %s38, 1
          %s600 = scalar_select %p599, %s38, 1
          %s601 = scalar_lea.vmem %s11, %s600
        $region72: #{tpu_custom_call.1} parent=43 // pred_fallthru
          _
        // Predicated region
        $region73: #{tpu_custom_call.1} parent=43 // pred_check
          %p602 = pneg %p349
        $region74: #{tpu_custom_call.1} parent=43 // pred_check_branch
          %604 = sbr.rel (%p602) target = $region76
        $region75: #{tpu_custom_call.1} parent=43 // pred_region
          %p605 = scmp.lt.s32.totalorder %s38, 1
          %s606 = scalar_select %p605, %s38, 1
          %s607 = scalar_lea.vmem %s12, %s606
        $region76: #{tpu_custom_call.1} parent=43 // pred_fallthru
          _
        // Predicated region
        $region77: #{tpu_custom_call.1} parent=43 // pred_check
          %p608 = pneg %p375
        $region78: #{tpu_custom_call.1} parent=43 // pred_check_branch
          %610 = sbr.rel (%p608) target = $region80
        $region79: #{tpu_custom_call.1} parent=43 // pred_region
          %p611 = scmp.lt.s32.totalorder %s38, 1
          %s612 = scalar_select %p611, %s38, 1
          %s613 = scalar_lea.vmem %s13, %s612
        $region80: #{tpu_custom_call.1} parent=43 // pred_fallthru
          _
      $region44: #{tpu_custom_call.1} parent=5 // pred_fallthru
        _
      %p614 = scmp.le.s32.totalorder 1, %s30
      %p615 = scmp.lt.s32.totalorder %s30, 5
      %p616 = pnand %p614, %p615
      %p617 = pneg %p616
      // Predicated region
      $region81: #{tpu_custom_call.1} parent=5 // pred_check
        _
      $region82: #{tpu_custom_call.1} parent=5 // pred_check_branch
        %619 = sbr.rel (%p616) target = $region84
      $region83: #{tpu_custom_call.1} parent=5 // pred_region
        %s620 = ssub.s32 %s30, 1
        // Predicated region
        $region85: #{tpu_custom_call.1} parent=83 // pred_check
          %p621 = pneg %p63
        $region86: #{tpu_custom_call.1} parent=83 // pred_check_branch
          %623 = sbr.rel (%p621) target = $region88
        $region87: #{tpu_custom_call.1} parent=83 // pred_region
          %624 = dma.done [#allocation6], 16
        $region88: #{tpu_custom_call.1} parent=83 // pred_fallthru
          _
        %s625 = sand.u32 %s35, 1
        %s626 = scalar_lea.sflag [#allocation4], %s625
        %s627 = sand.u32 %s76, 1
        %s628 = smul.addr %s627, 128
        %s629 = scalar_lea.vmem [#allocation7], %s628
        // Predicated region
        $region89: #{tpu_custom_call.1} parent=83 // pred_check
          %p630 = pneg %p89
        $region90: #{tpu_custom_call.1} parent=83 // pred_check_branch
          %632 = sbr.rel (%p630) target = $region92
        $region91: #{tpu_custom_call.1} parent=83 // pred_region
          %633 = dma.done %s626, 2048
        $region92: #{tpu_custom_call.1} parent=83 // pred_fallthru
          _
        // Predicated region
        $region93: #{tpu_custom_call.1} parent=83 // pred_check
          %p634 = pneg %p110
        $region94: #{tpu_custom_call.1} parent=83 // pred_check_branch
          %636 = sbr.rel (%p634) target = $region96
        $region95: #{tpu_custom_call.1} parent=83 // pred_region
          %637 = dma.done [#allocation9], 2048
        $region96: #{tpu_custom_call.1} parent=83 // pred_fallthru
          _
        %s638 = sand.u32 %s35, 1
        %s639 = scalar_lea.sflag [#allocation4], %s638
        %s640 = sand.u32 %s186, 1
        %s641 = smul.addr %s640, 128
        %s642 = scalar_lea.vmem [#allocation10], %s641
        // Predicated region
        $region97: #{tpu_custom_call.1} parent=83 // pred_check
          %p643 = pneg %p199
        $region98: #{tpu_custom_call.1} parent=83 // pred_check_branch
          %645 = sbr.rel (%p643) target = $region100
        $region99: #{tpu_custom_call.1} parent=83 // pred_region
          %646 = dma.done %s639, 2048
        $region100: #{tpu_custom_call.1} parent=83 // pred_fallthru
          _
        %s647 = sand.u32 %s35, 1
        %s648 = scalar_lea.sflag [#allocation4], %s647
        %s649 = sand.u32 %s290, 1
        %s650 = smul.addr %s649, 128
        %s651 = scalar_lea.vmem [#allocation11], %s650
        // Predicated region
        $region101: #{tpu_custom_call.1} parent=83 // pred_check
          %p652 = pneg %p303
        $region102: #{tpu_custom_call.1} parent=83 // pred_check_branch
          %654 = sbr.rel (%p652) target = $region104
        $region103: #{tpu_custom_call.1} parent=83 // pred_region
          %655 = dma.done %s648, 2048
        $region104: #{tpu_custom_call.1} parent=83 // pred_fallthru
          _
        // Predicated region
        $region105: #{tpu_custom_call.1} parent=83 // pred_check
          %p656 = pneg %p402
        $region106: #{tpu_custom_call.1} parent=83 // pred_check_branch
          %658 = sbr.rel (%p656) target = $region108
        $region107: #{tpu_custom_call.1} parent=83 // pred_region
          %659 = dma.done [#allocation9], 2048
        $region108: #{tpu_custom_call.1} parent=83 // pred_fallthru
          _
        %660 = sfence
        %p661 = pneg %p63
        %p662 = pneg %p60
        %s663 = sand.u32 %s35, 1
        %s664 = scalar_lea.sflag [#allocation4], %s663
        %s665 = sand.u32 %s76, 1
        %s666 = smul.addr %s665, 128
        %s667 = scalar_lea.vmem [#allocation7], %s666
        %p668 = pneg %p89
        %p669 = pneg %p86
        %p670 = pneg %p110
        %p671 = pneg %p107
        %p672 = pneg %p131
        %p673 = pneg %p128
        %p674 = pneg %p152
        %p675 = pneg %p149
        %p676 = pneg %p173
        %p677 = pneg %p170
        %s678 = sand.u32 %s35, 1
        %s679 = scalar_lea.sflag [#allocation4], %s678
        %s680 = sand.u32 %s186, 1
        %s681 = smul.addr %s680, 128
        %s682 = scalar_lea.vmem [#allocation10], %s681
        %p683 = pneg %p199
        %p684 = pneg %p196
        %p685 = scmp.lt.s32.totalorder %s40, 1
        %s686 = scalar_select %p685, %s40, 1
        %s687 = scalar_lea.vmem %s7, %s686
        %p688 = pneg %p225
        %p689 = pneg %p222
        %p690 = scmp.lt.s32.totalorder %s40, 1
        %s691 = scalar_select %p690, %s40, 1
        %s692 = scalar_lea.vmem %s8, %s691
        %p693 = pneg %p251
        %p694 = pneg %p248
        %p695 = scmp.lt.s32.totalorder %s40, 1
        %s696 = scalar_select %p695, %s40, 1
        %s697 = scalar_lea.vmem %s9, %s696
        %p698 = pneg %p277
        %p699 = pneg %p274
        %s700 = sand.u32 %s35, 1
        %s701 = scalar_lea.sflag [#allocation4], %s700
        %s702 = sand.u32 %s290, 1
        %s703 = smul.addr %s702, 128
        %s704 = scalar_lea.vmem [#allocation11], %s703
        %p705 = pneg %p303
        %p706 = pneg %p300
        %p707 = scmp.lt.s32.totalorder %s40, 1
        %s708 = scalar_select %p707, %s40, 1
        %s709 = scalar_lea.vmem %s11, %s708
        %p710 = pneg %p329
        %p711 = pneg %p326
        %p712 = scmp.lt.s32.totalorder %s40, 1
        %s713 = scalar_select %p712, %s40, 1
        %s714 = scalar_lea.vmem %s12, %s713
        %p715 = pneg %p355
        %p716 = pneg %p352
        %p717 = scmp.lt.s32.totalorder %s40, 1
        %s718 = scalar_select %p717, %s40, 1
        %s719 = scalar_lea.vmem %s13, %s718
        %p720 = pneg %p381
        %p721 = pneg %p378
        %p722 = pneg %p402
        %p723 = pneg %p399
        %p724 = pneg %p423
        %p725 = pneg %p420
        %p726 = pneg %p449
        %p727 = pneg %p446
        %s728 = sand.u32 %s436, 1
        %s729 = scalar_lea.sflag [#allocation5], %s728
        %s730 = sand.u32 %s436, 1
        %s731 = smul.addr %s730, 128
        %s732 = scalar_lea.vmem [#allocation13], %s731
        %s733 = smul.u32 16, %s39
        %p734 = scmp.lt.s32.totalorder %s40, 1
        %s735 = scalar_select %p734, %s40, 1
        %s736 = scalar_lea.vmem %s7, %s735
        %p737 = scmp.lt.s32.totalorder %s40, 1
        %s738 = scalar_select %p737, %s40, 1
        %s739 = scalar_lea.vmem %s8, %s738
        %p740 = scmp.lt.s32.totalorder %s40, 1
        %s741 = scalar_select %p740, %s40, 1
        %s742 = scalar_lea.vmem %s9, %s741
        %p743 = scmp.lt.s32.totalorder %s40, 1
        %s744 = scalar_select %p743, %s40, 1
        %s745 = scalar_lea.vmem %s11, %s744
        %p746 = scmp.lt.s32.totalorder %s40, 1
        %s747 = scalar_select %p746, %s40, 1
        %s748 = scalar_lea.vmem %s12, %s747
        %p749 = scmp.lt.s32.totalorder %s40, 1
        %s750 = scalar_select %p749, %s40, 1
        %s751 = scalar_lea.vmem %s13, %s750
        %s752 = smul.u32 16, %s39
        %p753 = scmp.eq.s32.totalorder %s40, 0
        // Predicated region
        $region109: #{tpu_custom_call.1} parent=83 // pred_check
          %p754 = pneg %p753
        $region110: #{tpu_custom_call.1} parent=83 // pred_check_branch
          %756 = sbr.rel (%p754) target = $region112
        $region111: #{tpu_custom_call.1} parent=83 // pred_region
          %v757 = vld [vmem:[%s629] sm:$0xff]
          %v758 = vld [vmem:[%s629 + $0x8] sm:$0xff]
          %v759 = vld [vmem:[%s629 + $0x10] sm:$0xff]
          %v760 = vld [vmem:[%s629 + $0x18] sm:$0xff]
          %v761 = vld [vmem:[%s629 + $0x20] sm:$0xff]
          %v762 = vld [vmem:[%s629 + $0x28] sm:$0xff]
          %v763 = vld [vmem:[%s629 + $0x30] sm:$0xff]
          %v764 = vld [vmem:[%s629 + $0x38] sm:$0xff]
          %v765 = vld [vmem:[%s629 + $0x40] sm:$0xff]
          %v766 = vld [vmem:[%s629 + $0x48] sm:$0xff]
          %v767 = vld [vmem:[%s629 + $0x50] sm:$0xff]
          %v768 = vld [vmem:[%s629 + $0x58] sm:$0xff]
          %v769 = vld [vmem:[%s629 + $0x60] sm:$0xff]
          %v770 = vld [vmem:[%s629 + $0x68] sm:$0xff]
          %v771 = vld [vmem:[%s629 + $0x70] sm:$0xff]
          %v772 = vld [vmem:[%s629 + $0x78] sm:$0xff]
          %v773 = vld [vmem:[#allocation8] sm:$0xff]
          %v774 = vld [vmem:[#allocation8 + $0x8] sm:$0xff]
          %v775 = vld [vmem:[#allocation8 + $0x10] sm:$0xff]
          %v776 = vld [vmem:[#allocation8 + $0x18] sm:$0xff]
          %v777 = vld [vmem:[#allocation8 + $0x20] sm:$0xff]
          %v778 = vld [vmem:[#allocation8 + $0x28] sm:$0xff]
          %v779 = vld [vmem:[#allocation8 + $0x30] sm:$0xff]
          %v780 = vld [vmem:[#allocation8 + $0x38] sm:$0xff]
          %v781 = vld [vmem:[#allocation8 + $0x40] sm:$0xff]
          %v782 = vld [vmem:[#allocation8 + $0x48] sm:$0xff]
          %v783 = vld [vmem:[#allocation8 + $0x50] sm:$0xff]
          %v784 = vld [vmem:[#allocation8 + $0x58] sm:$0xff]
          %v785 = vld [vmem:[#allocation8 + $0x60] sm:$0xff]
          %v786 = vld [vmem:[#allocation8 + $0x68] sm:$0xff]
          %v787 = vld [vmem:[#allocation8 + $0x70] sm:$0xff]
          %v788 = vld [vmem:[#allocation8 + $0x78] sm:$0xff]
          %v789 = vld [vmem:[%s3] sm:$0x1]
          %v791 = vlaneseq
          %v792 = vshrl.u32 %v791, 7
          %v793 = vsub.s32 0, %v792
          %v794 = vrot.slane %v789, %v793
          %796 = vmatprep.subr.mxu0 0.0
          %797 = vmatpush1.msra.mxu0 %v773
          %798 = vmatprep.subr.mxu0 0.0
          %799 = vmatpush1.msra.mxu0 %v774
          %800 = vmatprep.subr.mxu0 0.0
          %801 = vmatpush1.msra.mxu0 %v775
          %802 = vmatprep.subr.mxu0 0.0
          %803 = vmatpush1.msra.mxu0 %v776
          %804 = vmatprep.subr.mxu0 0.0
          %805 = vmatpush1.msra.mxu0 %v777
          %806 = vmatprep.subr.mxu0 0.0
          %807 = vmatpush1.msra.mxu0 %v778
          %808 = vmatprep.subr.mxu0 0.0
          %809 = vmatpush1.msra.mxu0 %v779
          %810 = vmatprep.subr.mxu0 0.0
          %811 = vmatpush1.msra.mxu0 %v780
          %812 = vmatprep.subr.mxu0 0.0
          %813 = vmatpush1.msra.mxu0 %v781
          %814 = vmatprep.subr.mxu0 0.0
          %815 = vmatpush1.msra.mxu0 %v782
          %816 = vmatprep.subr.mxu0 0.0
          %817 = vmatpush1.msra.mxu0 %v783
          %818 = vmatprep.subr.mxu0 0.0
          %819 = vmatpush1.msra.mxu0 %v784
          %820 = vmatprep.subr.mxu0 0.0
          %821 = vmatpush1.msra.mxu0 %v785
          %822 = vmatprep.subr.mxu0 0.0
          %823 = vmatpush1.msra.mxu0 %v786
          %824 = vmatprep.subr.mxu0 0.0
          %825 = vmatpush1.msra.mxu0 %v787
          %826 = vmatprep.subr.mxu0 0.0
          %827 = vmatpush1.msra.mxu0 %v788
          %828 = vmatprep.subr.mxu0 0.0
          %829 = vmatpush1.msra.mxu0 0.0
          %830 = vmatprep.subr.mxu0 0.0
          %831 = vmatpush1.msra.mxu0 0.0
          %832 = vmatprep.subr.mxu0 0.0
          %833 = vmatpush1.msra.mxu0 0.0
          %834 = vmatprep.subr.mxu0 0.0
          %835 = vmatpush1.msra.mxu0 0.0
          %836 = vmatprep.subr.mxu0 0.0
          %837 = vmatpush1.msra.mxu0 0.0
          %838 = vmatprep.subr.mxu0 0.0
          %839 = vmatpush1.msra.mxu0 0.0
          %840 = vmatprep.subr.mxu0 0.0
          %841 = vmatpush1.msra.mxu0 0.0
          %842 = vmatprep.subr.mxu0 0.0
          %843 = vmatpush1.msra.mxu0 0.0
          %844 = vmatprep.subr.mxu0 0.0
          %845 = vmatpush1.msra.mxu0 0.0
          %846 = vmatprep.subr.mxu0 0.0
          %847 = vmatpush1.msra.mxu0 0.0
          %848 = vmatprep.subr.mxu0 0.0
          %849 = vmatpush1.msra.mxu0 0.0
          %850 = vmatprep.subr.mxu0 0.0
          %851 = vmatpush1.msra.mxu0 0.0
          %852 = vmatprep.subr.mxu0 0.0
          %853 = vmatpush1.msra.mxu0 0.0
          %854 = vmatprep.subr.mxu0 0.0
          %855 = vmatpush1.msra.mxu0 0.0
          %856 = vmatprep.subr.mxu0 0.0
          %857 = vmatpush1.msra.mxu0 0.0
          %858 = vmatprep.subr.mxu0 0.0
          %859 = vmatpush1.msra.mxu0 0.0
          %860 = vmatprep.mubr.f32.mxu0 0.0
          %861 = vmatmul.mubr.f32.gmra.mrb[0].mxu0 %v757
          %v862 = vpop.f32.mrb[0].mxu0
          %v863 = vadd.f32 %v794, %v862
          %v864 = vpop.f32.mrb[0].mxu0
          %865 = vmatprep.mubr.f32.mxu0 0.0
          %866 = vmatmul.mubr.f32.gmra.mrb[0].mxu0 %v758
          %v867 = vpop.f32.mrb[0].mxu0
          %v868 = vadd.f32 %v794, %v867
          %v869 = vpop.f32.mrb[0].mxu0
          %870 = vmatprep.mubr.f32.mxu0 0.0
          %871 = vmatmul.mubr.f32.gmra.mrb[0].mxu0 %v759
          %v872 = vpop.f32.mrb[0].mxu0
          %v873 = vadd.f32 %v794, %v872
          %v874 = vpop.f32.mrb[0].mxu0
          %875 = vmatprep.mubr.f32.mxu0 0.0
          %876 = vmatmul.mubr.f32.gmra.mrb[0].mxu0 %v760
          %v877 = vpop.f32.mrb[0].mxu0
          %v878 = vadd.f32 %v794, %v877
          %v879 = vpop.f32.mrb[0].mxu0
          %880 = vmatprep.mubr.f32.mxu0 0.0
          %881 = vmatmul.mubr.f32.gmra.mrb[0].mxu0 %v761
          %v882 = vpop.f32.mrb[0].mxu0
          %v883 = vadd.f32 %v794, %v882
          %v884 = vpop.f32.mrb[0].mxu0
          %885 = vmatprep.mubr.f32.mxu0 0.0
          %886 = vmatmul.mubr.f32.gmra.mrb[0].mxu0 %v762
          %v887 = vpop.f32.mrb[0].mxu0
          %v888 = vadd.f32 %v794, %v887
          %v889 = vpop.f32.mrb[0].mxu0
          %890 = vmatprep.mubr.f32.mxu0 0.0
          %891 = vmatmul.mubr.f32.gmra.mrb[0].mxu0 %v763
          %v892 = vpop.f32.mrb[0].mxu0
          %v893 = vadd.f32 %v794, %v892
          %v894 = vpop.f32.mrb[0].mxu0
          %895 = vmatprep.mubr.f32.mxu0 0.0
          %896 = vmatmul.mubr.f32.gmra.mrb[0].mxu0 %v764
          %v897 = vpop.f32.mrb[0].mxu0
          %v898 = vadd.f32 %v794, %v897
          %v899 = vpop.f32.mrb[0].mxu0
          %900 = vmatprep.mubr.f32.mxu0 0.0
          %901 = vmatmul.mubr.f32.gmra.mrb[0].mxu0 %v765
          %v902 = vpop.f32.mrb[0].mxu0
          %v903 = vadd.f32 %v794, %v902
          %v904 = vpop.f32.mrb[0].mxu0
          %905 = vmatprep.mubr.f32.mxu0 0.0
          %906 = vmatmul.mubr.f32.gmra.mrb[0].mxu0 %v766
          %v907 = vpop.f32.mrb[0].mxu0
          %v908 = vadd.f32 %v794, %v907
          %v909 = vpop.f32.mrb[0].mxu0
          %910 = vmatprep.mubr.f32.mxu0 0.0
          %911 = vmatmul.mubr.f32.gmra.mrb[0].mxu0 %v767
          %v912 = vpop.f32.mrb[0].mxu0
          %v913 = vadd.f32 %v794, %v912
          %v914 = vpop.f32.mrb[0].mxu0
          %915 = vmatprep.mubr.f32.mxu0 0.0
          %916 = vmatmul.mubr.f32.gmra.mrb[0].mxu0 %v768
          %v917 = vpop.f32.mrb[0].mxu0
          %v918 = vadd.f32 %v794, %v917
          %v919 = vpop.f32.mrb[0].mxu0
          %920 = vmatprep.mubr.f32.mxu0 0.0
          %921 = vmatmul.mubr.f32.gmra.mrb[0].mxu0 %v769
          %v922 = vpop.f32.mrb[0].mxu0
          %v923 = vadd.f32 %v794, %v922
          %v924 = vpop.f32.mrb[0].mxu0
          %925 = vmatprep.mubr.f32.mxu0 0.0
          %926 = vmatmul.mubr.f32.gmra.mrb[0].mxu0 %v770
          %v927 = vpop.f32.mrb[0].mxu0
          %v928 = vadd.f32 %v794, %v927
          %v929 = vpop.f32.mrb[0].mxu0
          %930 = vmatprep.mubr.f32.mxu0 0.0
          %931 = vmatmul.mubr.f32.gmra.mrb[0].mxu0 %v771
          %v932 = vpop.f32.mrb[0].mxu0
          %v933 = vadd.f32 %v794, %v932
          %v934 = vpop.f32.mrb[0].mxu0
          %935 = vmatprep.mubr.f32.mxu0 0.0
          %936 = vmatmul.mubr.f32.gmra.mrb[0].mxu0 %v772
          %v937 = vpop.f32.mrb[0].mxu0
          %v938 = vadd.f32 %v794, %v937
          %v939 = vpop.f32.mrb[0].mxu0
          %940 = vdwg.mxu0
          %v941 = vld [vmem:[%s4] sm:$0x1]
          %v942 = vld [vmem:[%s5] sm:$0x1]
          %943 = vadd.xlane.f32.xlu0 %v863
          %v944 = vpop.xlane.xlu0 %943
          %945 = vadd.xlane.f32.xlu0 %v868
          %v946 = vpop.xlane.xlu0 %945
          %947 = vadd.xlane.f32.xlu0 %v873
          %v948 = vpop.xlane.xlu0 %947
          %949 = vadd.xlane.f32.xlu0 %v878
          %v950 = vpop.xlane.xlu0 %949
          %951 = vadd.xlane.f32.xlu0 %v883
          %v952 = vpop.xlane.xlu0 %951
          %953 = vadd.xlane.f32.xlu0 %v888
          %v954 = vpop.xlane.xlu0 %953
          %955 = vadd.xlane.f32.xlu0 %v893
          %v956 = vpop.xlane.xlu0 %955
          %957 = vadd.xlane.f32.xlu0 %v898
          %v958 = vpop.xlane.xlu0 %957
          %959 = vadd.xlane.f32.xlu0 %v903
          %v960 = vpop.xlane.xlu0 %959
          %961 = vadd.xlane.f32.xlu0 %v908
          %v962 = vpop.xlane.xlu0 %961
          %963 = vadd.xlane.f32.xlu0 %v913
          %v964 = vpop.xlane.xlu0 %963
          %965 = vadd.xlane.f32.xlu0 %v918
          %v966 = vpop.xlane.xlu0 %965
          %967 = vadd.xlane.f32.xlu0 %v923
          %v968 = vpop.xlane.xlu0 %967
          %969 = vadd.xlane.f32.xlu0 %v928
          %v970 = vpop.xlane.xlu0 %969
          %971 = vadd.xlane.f32.xlu0 %v933
          %v972 = vpop.xlane.xlu0 %971
          %973 = vadd.xlane.f32.xlu0 %v938
          %v974 = vpop.xlane.xlu0 %973
          %v975 = vmul.f32 %v863, %v863
          %v976 = vmul.f32 %v868, %v868
          %v977 = vmul.f32 %v873, %v873
          %v978 = vmul.f32 %v878, %v878
          %v979 = vmul.f32 %v883, %v883
          %v980 = vmul.f32 %v888, %v888
          %v981 = vmul.f32 %v893, %v893
          %v982 = vmul.f32 %v898, %v898
          %v983 = vmul.f32 %v903, %v903
          %v984 = vmul.f32 %v908, %v908
          %v985 = vmul.f32 %v913, %v913
          %v986 = vmul.f32 %v918, %v918
          %v987 = vmul.f32 %v923, %v923
          %v988 = vmul.f32 %v928, %v928
          %v989 = vmul.f32 %v933, %v933
          %v990 = vmul.f32 %v938, %v938
          %991 = vadd.xlane.f32.xlu0 %v975
          %v992 = vpop.xlane.xlu0 %991
          %993 = vadd.xlane.f32.xlu0 %v976
          %v994 = vpop.xlane.xlu0 %993
          %995 = vadd.xlane.f32.xlu0 %v977
          %v996 = vpop.xlane.xlu0 %995
          %997 = vadd.xlane.f32.xlu0 %v978
          %v998 = vpop.xlane.xlu0 %997
          %999 = vadd.xlane.f32.xlu0 %v979
          %v1000 = vpop.xlane.xlu0 %999
          %1001 = vadd.xlane.f32.xlu0 %v980
          %v1002 = vpop.xlane.xlu0 %1001
          %1003 = vadd.xlane.f32.xlu0 %v981
          %v1004 = vpop.xlane.xlu0 %1003
          %1005 = vadd.xlane.f32.xlu0 %v982
          %v1006 = vpop.xlane.xlu0 %1005
          %1007 = vadd.xlane.f32.xlu0 %v983
          %v1008 = vpop.xlane.xlu0 %1007
          %1009 = vadd.xlane.f32.xlu0 %v984
          %v1010 = vpop.xlane.xlu0 %1009
          %1011 = vadd.xlane.f32.xlu0 %v985
          %v1012 = vpop.xlane.xlu0 %1011
          %1013 = vadd.xlane.f32.xlu0 %v986
          %v1014 = vpop.xlane.xlu0 %1013
          %1015 = vadd.xlane.f32.xlu0 %v987
          %v1016 = vpop.xlane.xlu0 %1015
          %1017 = vadd.xlane.f32.xlu0 %v988
          %v1018 = vpop.xlane.xlu0 %1017
          %1019 = vadd.xlane.f32.xlu0 %v989
          %v1020 = vpop.xlane.xlu0 %1019
          %1021 = vadd.xlane.f32.xlu0 %v990
          %v1022 = vpop.xlane.xlu0 %1021
          %v1023 = vmul.f32 %v944, 0.0078125
          %v1024 = vmul.f32 %v946, 0.0078125
          %v1025 = vmul.f32 %v948, 0.0078125
          %v1026 = vmul.f32 %v950, 0.0078125
          %v1027 = vmul.f32 %v952, 0.0078125
          %v1028 = vmul.f32 %v954, 0.0078125
          %v1029 = vmul.f32 %v956, 0.0078125
          %v1030 = vmul.f32 %v958, 0.0078125
          %v1031 = vmul.f32 %v960, 0.0078125
          %v1032 = vmul.f32 %v962, 0.0078125
          %v1033 = vmul.f32 %v964, 0.0078125
          %v1034 = vmul.f32 %v966, 0.0078125
          %v1035 = vmul.f32 %v968, 0.0078125
          %v1036 = vmul.f32 %v970, 0.0078125
          %v1037 = vmul.f32 %v972, 0.0078125
          %v1038 = vmul.f32 %v974, 0.0078125
          %v1039 = vmul.f32 %v992, 0.0078125
          %v1040 = vmul.f32 %v994, 0.0078125
          %v1041 = vmul.f32 %v996, 0.0078125
          %v1042 = vmul.f32 %v998, 0.0078125
          %v1043 = vmul.f32 %v1000, 0.0078125
          %v1044 = vmul.f32 %v1002, 0.0078125
          %v1045 = vmul.f32 %v1004, 0.0078125
          %v1046 = vmul.f32 %v1006, 0.0078125
          %v1047 = vmul.f32 %v1008, 0.0078125
          %v1048 = vmul.f32 %v1010, 0.0078125
          %v1049 = vmul.f32 %v1012, 0.0078125
          %v1050 = vmul.f32 %v1014, 0.0078125
          %v1051 = vmul.f32 %v1016, 0.0078125
          %v1052 = vmul.f32 %v1018, 0.0078125
          %v1053 = vmul.f32 %v1020, 0.0078125
          %v1054 = vmul.f32 %v1022, 0.0078125
          %v1055 = vmul.f32 %v1023, %v1023
          %v1056 = vmul.f32 %v1024, %v1024
          %v1057 = vmul.f32 %v1025, %v1025
          %v1058 = vmul.f32 %v1026, %v1026
          %v1059 = vmul.f32 %v1027, %v1027
          %v1060 = vmul.f32 %v1028, %v1028
          %v1061 = vmul.f32 %v1029, %v1029
          %v1062 = vmul.f32 %v1030, %v1030
          %v1063 = vmul.f32 %v1031, %v1031
          %v1064 = vmul.f32 %v1032, %v1032
          %v1065 = vmul.f32 %v1033, %v1033
          %v1066 = vmul.f32 %v1034, %v1034
          %v1067 = vmul.f32 %v1035, %v1035
          %v1068 = vmul.f32 %v1036, %v1036
          %v1069 = vmul.f32 %v1037, %v1037
          %v1070 = vmul.f32 %v1038, %v1038
          %v1071 = vsub.f32 %v1039, %v1055
          %v1072 = vsub.f32 %v1040, %v1056
          %v1073 = vsub.f32 %v1041, %v1057
          %v1074 = vsub.f32 %v1042, %v1058
          %v1075 = vsub.f32 %v1043, %v1059
          %v1076 = vsub.f32 %v1044, %v1060
          %v1077 = vsub.f32 %v1045, %v1061
          %v1078 = vsub.f32 %v1046, %v1062
          %v1079 = vsub.f32 %v1047, %v1063
          %v1080 = vsub.f32 %v1048, %v1064
          %v1081 = vsub.f32 %v1049, %v1065
          %v1082 = vsub.f32 %v1050, %v1066
          %v1083 = vsub.f32 %v1051, %v1067
          %v1084 = vsub.f32 %v1052, %v1068
          %v1085 = vsub.f32 %v1053, %v1069
          %v1086 = vsub.f32 %v1054, %v1070
          %v1087 = vsub.f32 %v863, %v1023
          %v1088 = vsub.f32 %v868, %v1024
          %v1089 = vsub.f32 %v873, %v1025
          %v1090 = vsub.f32 %v878, %v1026
          %v1091 = vsub.f32 %v883, %v1027
          %v1092 = vsub.f32 %v888, %v1028
          %v1093 = vsub.f32 %v893, %v1029
          %v1094 = vsub.f32 %v898, %v1030
          %v1095 = vsub.f32 %v903, %v1031
          %v1096 = vsub.f32 %v908, %v1032
          %v1097 = vsub.f32 %v913, %v1033
          %v1098 = vsub.f32 %v918, %v1034
          %v1099 = vsub.f32 %v923, %v1035
          %v1100 = vsub.f32 %v928, %v1036
          %v1101 = vsub.f32 %v933, %v1037
          %v1102 = vsub.f32 %v938, %v1038
          %v1103 = vadd.f32 %v1071, 1e-05
          %v1104 = vadd.f32 %v1072, 1e-05
          %v1105 = vadd.f32 %v1073, 1e-05
          %v1106 = vadd.f32 %v1074, 1e-05
          %v1107 = vadd.f32 %v1075, 1e-05
          %v1108 = vadd.f32 %v1076, 1e-05
          %v1109 = vadd.f32 %v1077, 1e-05
          %v1110 = vadd.f32 %v1078, 1e-05
          %v1111 = vadd.f32 %v1079, 1e-05
          %v1112 = vadd.f32 %v1080, 1e-05
          %v1113 = vadd.f32 %v1081, 1e-05
          %v1114 = vadd.f32 %v1082, 1e-05
          %v1115 = vadd.f32 %v1083, 1e-05
          %v1116 = vadd.f32 %v1084, 1e-05
          %v1117 = vadd.f32 %v1085, 1e-05
          %v1118 = vadd.f32 %v1086, 1e-05
          %v1119 = vrsqrt.pop %v1103
          %v1120 = vrsqrt.pop %v1104
          %v1121 = vrsqrt.pop %v1105
          %v1122 = vrsqrt.pop %v1106
          %v1123 = vrsqrt.pop %v1107
          %v1124 = vrsqrt.pop %v1108
          %v1125 = vrsqrt.pop %v1109
          %v1126 = vrsqrt.pop %v1110
          %v1127 = vrsqrt.pop %v1111
          %v1128 = vrsqrt.pop %v1112
          %v1129 = vrsqrt.pop %v1113
          %v1130 = vrsqrt.pop %v1114
          %v1131 = vrsqrt.pop %v1115
          %v1132 = vrsqrt.pop %v1116
          %v1133 = vrsqrt.pop %v1117
          %v1134 = vrsqrt.pop %v1118
          %v1135 = vmul.f32 %v1087, %v1119
          %v1136 = vmul.f32 %v1088, %v1120
          %v1137 = vmul.f32 %v1089, %v1121
          %v1138 = vmul.f32 %v1090, %v1122
          %v1139 = vmul.f32 %v1091, %v1123
          %v1140 = vmul.f32 %v1092, %v1124
          %v1141 = vmul.f32 %v1093, %v1125
          %v1142 = vmul.f32 %v1094, %v1126
          %v1143 = vmul.f32 %v1095, %v1127
          %v1144 = vmul.f32 %v1096, %v1128
          %v1145 = vmul.f32 %v1097, %v1129
          %v1146 = vmul.f32 %v1098, %v1130
          %v1147 = vmul.f32 %v1099, %v1131
          %v1148 = vmul.f32 %v1100, %v1132
          %v1149 = vmul.f32 %v1101, %v1133
          %v1150 = vmul.f32 %v1102, %v1134
          %v1152 = vlaneseq
          %v1153 = vshrl.u32 %v1152, 7
          %v1154 = vsub.s32 0, %v1153
          %v1155 = vrot.slane %v941, %v1154
          %v1157 = vmul.f32 %v1135, %v1155
          %v1158 = vmul.f32 %v1136, %v1155
          %v1159 = vmul.f32 %v1137, %v1155
          %v1160 = vmul.f32 %v1138, %v1155
          %v1161 = vmul.f32 %v1139, %v1155
          %v1162 = vmul.f32 %v1140, %v1155
          %v1163 = vmul.f32 %v1141, %v1155
          %v1164 = vmul.f32 %v1142, %v1155
          %v1165 = vmul.f32 %v1143, %v1155
          %v1166 = vmul.f32 %v1144, %v1155
          %v1167 = vmul.f32 %v1145, %v1155
          %v1168 = vmul.f32 %v1146, %v1155
          %v1169 = vmul.f32 %v1147, %v1155
          %v1170 = vmul.f32 %v1148, %v1155
          %v1171 = vmul.f32 %v1149, %v1155
          %v1172 = vmul.f32 %v1150, %v1155
          %v1174 = vlaneseq
          %v1175 = vshrl.u32 %v1174, 7
          %v1176 = vsub.s32 0, %v1175
          %v1177 = vrot.slane %v942, %v1176
          %v1179 = vadd.f32 %v1157, %v1177
          %v1180 = vadd.f32 %v1158, %v1177
          %v1181 = vadd.f32 %v1159, %v1177
          %v1182 = vadd.f32 %v1160, %v1177
          %v1183 = vadd.f32 %v1161, %v1177
          %v1184 = vadd.f32 %v1162, %v1177
          %v1185 = vadd.f32 %v1163, %v1177
          %v1186 = vadd.f32 %v1164, %v1177
          %v1187 = vadd.f32 %v1165, %v1177
          %v1188 = vadd.f32 %v1166, %v1177
          %v1189 = vadd.f32 %v1167, %v1177
          %v1190 = vadd.f32 %v1168, %v1177
          %v1191 = vadd.f32 %v1169, %v1177
          %v1192 = vadd.f32 %v1170, %v1177
          %v1193 = vadd.f32 %v1171, %v1177
          %v1194 = vadd.f32 %v1172, %v1177
          %vm1195 = vcmp.ge.f32.partialorder %v1179, 0.0
          %vm1196 = vcmp.ge.f32.partialorder %v1180, 0.0
          %vm1197 = vcmp.ge.f32.partialorder %v1181, 0.0
          %vm1198 = vcmp.ge.f32.partialorder %v1182, 0.0
          %vm1199 = vcmp.ge.f32.partialorder %v1183, 0.0
          %vm1200 = vcmp.ge.f32.partialorder %v1184, 0.0
          %vm1201 = vcmp.ge.f32.partialorder %v1185, 0.0
          %vm1202 = vcmp.ge.f32.partialorder %v1186, 0.0
          %vm1203 = vcmp.ge.f32.partialorder %v1187, 0.0
          %vm1204 = vcmp.ge.f32.partialorder %v1188, 0.0
          %vm1205 = vcmp.ge.f32.partialorder %v1189, 0.0
          %vm1206 = vcmp.ge.f32.partialorder %v1190, 0.0
          %vm1207 = vcmp.ge.f32.partialorder %v1191, 0.0
          %vm1208 = vcmp.ge.f32.partialorder %v1192, 0.0
          %vm1209 = vcmp.ge.f32.partialorder %v1193, 0.0
          %vm1210 = vcmp.ge.f32.partialorder %v1194, 0.0
          %v1211 = vmul.f32 %v1179, 0.2
          %v1212 = vmul.f32 %v1180, 0.2
          %v1213 = vmul.f32 %v1181, 0.2
          %v1214 = vmul.f32 %v1182, 0.2
          %v1215 = vmul.f32 %v1183, 0.2
          %v1216 = vmul.f32 %v1184, 0.2
          %v1217 = vmul.f32 %v1185, 0.2
          %v1218 = vmul.f32 %v1186, 0.2
          %v1219 = vmul.f32 %v1187, 0.2
          %v1220 = vmul.f32 %v1188, 0.2
          %v1221 = vmul.f32 %v1189, 0.2
          %v1222 = vmul.f32 %v1190, 0.2
          %v1223 = vmul.f32 %v1191, 0.2
          %v1224 = vmul.f32 %v1192, 0.2
          %v1225 = vmul.f32 %v1193, 0.2
          %v1226 = vmul.f32 %v1194, 0.2
          %v1227 = vsel %vm1195, %v1179, %v1211
          %v1228 = vsel %vm1196, %v1180, %v1212
          %v1229 = vsel %vm1197, %v1181, %v1213
          %v1230 = vsel %vm1198, %v1182, %v1214
          %v1231 = vsel %vm1199, %v1183, %v1215
          %v1232 = vsel %vm1200, %v1184, %v1216
          %v1233 = vsel %vm1201, %v1185, %v1217
          %v1234 = vsel %vm1202, %v1186, %v1218
          %v1235 = vsel %vm1203, %v1187, %v1219
          %v1236 = vsel %vm1204, %v1188, %v1220
          %v1237 = vsel %vm1205, %v1189, %v1221
          %v1238 = vsel %vm1206, %v1190, %v1222
          %v1239 = vsel %vm1207, %v1191, %v1223
          %v1240 = vsel %vm1208, %v1192, %v1224
          %v1241 = vsel %vm1209, %v1193, %v1225
          %v1242 = vsel %vm1210, %v1194, %v1226
          %1243 = vst [vmem:[#allocation2] sm:$0xff] %v1227
          %1244 = vst [vmem:[#allocation2 + $0x8] sm:$0xff] %v1228
          %1245 = vst [vmem:[#allocation2 + $0x10] sm:$0xff] %v1229
          %1246 = vst [vmem:[#allocation2 + $0x18] sm:$0xff] %v1230
          %1247 = vst [vmem:[#allocation2 + $0x20] sm:$0xff] %v1231
          %1248 = vst [vmem:[#allocation2 + $0x28] sm:$0xff] %v1232
          %1249 = vst [vmem:[#allocation2 + $0x30] sm:$0xff] %v1233
          %1250 = vst [vmem:[#allocation2 + $0x38] sm:$0xff] %v1234
          %1251 = vst [vmem:[#allocation2 + $0x40] sm:$0xff] %v1235
          %1252 = vst [vmem:[#allocation2 + $0x48] sm:$0xff] %v1236
          %1253 = vst [vmem:[#allocation2 + $0x50] sm:$0xff] %v1237
          %1254 = vst [vmem:[#allocation2 + $0x58] sm:$0xff] %v1238
          %1255 = vst [vmem:[#allocation2 + $0x60] sm:$0xff] %v1239
          %1256 = vst [vmem:[#allocation2 + $0x68] sm:$0xff] %v1240
          %1257 = vst [vmem:[#allocation2 + $0x70] sm:$0xff] %v1241
          %1258 = vst [vmem:[#allocation2 + $0x78] sm:$0xff] %v1242
        $region112: #{tpu_custom_call.1} parent=83 // pred_fallthru
          _
        %v1259 = vld [vmem:[#allocation2] sm:$0xff]
        %v1260 = vld [vmem:[#allocation2 + $0x8] sm:$0xff]
        %v1261 = vld [vmem:[#allocation2 + $0x10] sm:$0xff]
        %v1262 = vld [vmem:[#allocation2 + $0x18] sm:$0xff]
        %v1263 = vld [vmem:[#allocation2 + $0x20] sm:$0xff]
        %v1264 = vld [vmem:[#allocation2 + $0x28] sm:$0xff]
        %v1265 = vld [vmem:[#allocation2 + $0x30] sm:$0xff]
        %v1266 = vld [vmem:[#allocation2 + $0x38] sm:$0xff]
        %v1267 = vld [vmem:[#allocation2 + $0x40] sm:$0xff]
        %v1268 = vld [vmem:[#allocation2 + $0x48] sm:$0xff]
        %v1269 = vld [vmem:[#allocation2 + $0x50] sm:$0xff]
        %v1270 = vld [vmem:[#allocation2 + $0x58] sm:$0xff]
        %v1271 = vld [vmem:[#allocation2 + $0x60] sm:$0xff]
        %v1272 = vld [vmem:[#allocation2 + $0x68] sm:$0xff]
        %v1273 = vld [vmem:[#allocation2 + $0x70] sm:$0xff]
        %v1274 = vld [vmem:[#allocation2 + $0x78] sm:$0xff]
        %v1275 = vld [vmem:[%s642] sm:$0xff]
        %v1276 = vld [vmem:[%s642 + $0x8] sm:$0xff]
        %v1277 = vld [vmem:[%s642 + $0x10] sm:$0xff]
        %v1278 = vld [vmem:[%s642 + $0x18] sm:$0xff]
        %v1279 = vld [vmem:[%s642 + $0x20] sm:$0xff]
        %v1280 = vld [vmem:[%s642 + $0x28] sm:$0xff]
        %v1281 = vld [vmem:[%s642 + $0x30] sm:$0xff]
        %v1282 = vld [vmem:[%s642 + $0x38] sm:$0xff]
        %v1283 = vld [vmem:[%s642 + $0x40] sm:$0xff]
        %v1284 = vld [vmem:[%s642 + $0x48] sm:$0xff]
        %v1285 = vld [vmem:[%s642 + $0x50] sm:$0xff]
        %v1286 = vld [vmem:[%s642 + $0x58] sm:$0xff]
        %v1287 = vld [vmem:[%s642 + $0x60] sm:$0xff]
        %v1288 = vld [vmem:[%s642 + $0x68] sm:$0xff]
        %v1289 = vld [vmem:[%s642 + $0x70] sm:$0xff]
        %v1290 = vld [vmem:[%s642 + $0x78] sm:$0xff]
        %v1291 = vld [vmem:[%s736] sm:$0x1]
        %v1293 = vlaneseq
        %v1294 = vshrl.u32 %v1293, 7
        %v1295 = vsub.s32 0, %v1294
        %v1296 = vrot.slane %v1291, %v1295
        %1298 = vmatprep.subr.mxu0 0.0
        %1299 = vmatpush1.msra.mxu0 %v1275
        %1300 = vmatprep.subr.mxu0 0.0
        %1301 = vmatpush1.msra.mxu0 %v1276
        %1302 = vmatprep.subr.mxu0 0.0
        %1303 = vmatpush1.msra.mxu0 %v1277
        %1304 = vmatprep.subr.mxu0 0.0
        %1305 = vmatpush1.msra.mxu0 %v1278
        %1306 = vmatprep.subr.mxu0 0.0
        %1307 = vmatpush1.msra.mxu0 %v1279
        %1308 = vmatprep.subr.mxu0 0.0
        %1309 = vmatpush1.msra.mxu0 %v1280
        %1310 = vmatprep.subr.mxu0 0.0
        %1311 = vmatpush1.msra.mxu0 %v1281
        %1312 = vmatprep.subr.mxu0 0.0
        %1313 = vmatpush1.msra.mxu0 %v1282
        %1314 = vmatprep.subr.mxu0 0.0
        %1315 = vmatpush1.msra.mxu0 %v1283
        %1316 = vmatprep.subr.mxu0 0.0
        %1317 = vmatpush1.msra.mxu0 %v1284
        %1318 = vmatprep.subr.mxu0 0.0
        %1319 = vmatpush1.msra.mxu0 %v1285
        %1320 = vmatprep.subr.mxu0 0.0
        %1321 = vmatpush1.msra.mxu0 %v1286
        %1322 = vmatprep.subr.mxu0 0.0
        %1323 = vmatpush1.msra.mxu0 %v1287
        %1324 = vmatprep.subr.mxu0 0.0
        %1325 = vmatpush1.msra.mxu0 %v1288
        %1326 = vmatprep.subr.mxu0 0.0
        %1327 = vmatpush1.msra.mxu0 %v1289
        %1328 = vmatprep.subr.mxu0 0.0
        %1329 = vmatpush1.msra.mxu0 %v1290
        %1330 = vmatprep.subr.mxu0 0.0
        %1331 = vmatpush1.msra.mxu0 0.0
        %1332 = vmatprep.subr.mxu0 0.0
        %1333 = vmatpush1.msra.mxu0 0.0
        %1334 = vmatprep.subr.mxu0 0.0
        %1335 = vmatpush1.msra.mxu0 0.0
        %1336 = vmatprep.subr.mxu0 0.0
        %1337 = vmatpush1.msra.mxu0 0.0
        %1338 = vmatprep.subr.mxu0 0.0
        %1339 = vmatpush1.msra.mxu0 0.0
        %1340 = vmatprep.subr.mxu0 0.0
        %1341 = vmatpush1.msra.mxu0 0.0
        %1342 = vmatprep.subr.mxu0 0.0
        %1343 = vmatpush1.msra.mxu0 0.0
        %1344 = vmatprep.subr.mxu0 0.0
        %1345 = vmatpush1.msra.mxu0 0.0
        %1346 = vmatprep.subr.mxu0 0.0
        %1347 = vmatpush1.msra.mxu0 0.0
        %1348 = vmatprep.subr.mxu0 0.0
        %1349 = vmatpush1.msra.mxu0 0.0
        %1350 = vmatprep.subr.mxu0 0.0
        %1351 = vmatpush1.msra.mxu0 0.0
        %1352 = vmatprep.subr.mxu0 0.0
        %1353 = vmatpush1.msra.mxu0 0.0
        %1354 = vmatprep.subr.mxu0 0.0
        %1355 = vmatpush1.msra.mxu0 0.0
        %1356 = vmatprep.subr.mxu0 0.0
        %1357 = vmatpush1.msra.mxu0 0.0
        %1358 = vmatprep.subr.mxu0 0.0
        %1359 = vmatpush1.msra.mxu0 0.0
        %1360 = vmatprep.subr.mxu0 0.0
        %1361 = vmatpush1.msra.mxu0 0.0
        %1362 = vmatprep.mubr.f32.mxu0 0.0
        %1363 = vmatmul.mubr.f32.gmra.mrb[0].mxu0 %v1259
        %v1364 = vpop.f32.mrb[0].mxu0
        %v1365 = vadd.f32 %v1296, %v1364
        %v1366 = vpop.f32.mrb[0].mxu0
        %1367 = vmatprep.mubr.f32.mxu0 0.0
        %1368 = vmatmul.mubr.f32.gmra.mrb[0].mxu0 %v1260
        %v1369 = vpop.f32.mrb[0].mxu0
        %v1370 = vadd.f32 %v1296, %v1369
        %v1371 = vpop.f32.mrb[0].mxu0
        %1372 = vmatprep.mubr.f32.mxu0 0.0
        %1373 = vmatmul.mubr.f32.gmra.mrb[0].mxu0 %v1261
        %v1374 = vpop.f32.mrb[0].mxu0
        %v1375 = vadd.f32 %v1296, %v1374
        %v1376 = vpop.f32.mrb[0].mxu0
        %1377 = vmatprep.mubr.f32.mxu0 0.0
        %1378 = vmatmul.mubr.f32.gmra.mrb[0].mxu0 %v1262
        %v1379 = vpop.f32.mrb[0].mxu0
        %v1380 = vadd.f32 %v1296, %v1379
        %v1381 = vpop.f32.mrb[0].mxu0
        %1382 = vmatprep.mubr.f32.mxu0 0.0
        %1383 = vmatmul.mubr.f32.gmra.mrb[0].mxu0 %v1263
        %v1384 = vpop.f32.mrb[0].mxu0
        %v1385 = vadd.f32 %v1296, %v1384
        %v1386 = vpop.f32.mrb[0].mxu0
        %1387 = vmatprep.mubr.f32.mxu0 0.0
        %1388 = vmatmul.mubr.f32.gmra.mrb[0].mxu0 %v1264
        %v1389 = vpop.f32.mrb[0].mxu0
        %v1390 = vadd.f32 %v1296, %v1389
        %v1391 = vpop.f32.mrb[0].mxu0
        %1392 = vmatprep.mubr.f32.mxu0 0.0
        %1393 = vmatmul.mubr.f32.gmra.mrb[0].mxu0 %v1265
        %v1394 = vpop.f32.mrb[0].mxu0
        %v1395 = vadd.f32 %v1296, %v1394
        %v1396 = vpop.f32.mrb[0].mxu0
        %1397 = vmatprep.mubr.f32.mxu0 0.0
        %1398 = vmatmul.mubr.f32.gmra.mrb[0].mxu0 %v1266
        %v1399 = vpop.f32.mrb[0].mxu0
        %v1400 = vadd.f32 %v1296, %v1399
        %v1401 = vpop.f32.mrb[0].mxu0
        %1402 = vmatprep.mubr.f32.mxu0 0.0
        %1403 = vmatmul.mubr.f32.gmra.mrb[0].mxu0 %v1267
        %v1404 = vpop.f32.mrb[0].mxu0
        %v1405 = vadd.f32 %v1296, %v1404
        %v1406 = vpop.f32.mrb[0].mxu0
        %1407 = vmatprep.mubr.f32.mxu0 0.0
        %1408 = vmatmul.mubr.f32.gmra.mrb[0].mxu0 %v1268
        %v1409 = vpop.f32.mrb[0].mxu0
        %v1410 = vadd.f32 %v1296, %v1409
        %v1411 = vpop.f32.mrb[0].mxu0
        %1412 = vmatprep.mubr.f32.mxu0 0.0
        %1413 = vmatmul.mubr.f32.gmra.mrb[0].mxu0 %v1269
        %v1414 = vpop.f32.mrb[0].mxu0
        %v1415 = vadd.f32 %v1296, %v1414
        %v1416 = vpop.f32.mrb[0].mxu0
        %1417 = vmatprep.mubr.f32.mxu0 0.0
        %1418 = vmatmul.mubr.f32.gmra.mrb[0].mxu0 %v1270
        %v1419 = vpop.f32.mrb[0].mxu0
        %v1420 = vadd.f32 %v1296, %v1419
        %v1421 = vpop.f32.mrb[0].mxu0
        %1422 = vmatprep.mubr.f32.mxu0 0.0
        %1423 = vmatmul.mubr.f32.gmra.mrb[0].mxu0 %v1271
        %v1424 = vpop.f32.mrb[0].mxu0
        %v1425 = vadd.f32 %v1296, %v1424
        %v1426 = vpop.f32.mrb[0].mxu0
        %1427 = vmatprep.mubr.f32.mxu0 0.0
        %1428 = vmatmul.mubr.f32.gmra.mrb[0].mxu0 %v1272
        %v1429 = vpop.f32.mrb[0].mxu0
        %v1430 = vadd.f32 %v1296, %v1429
        %v1431 = vpop.f32.mrb[0].mxu0
        %1432 = vmatprep.mubr.f32.mxu0 0.0
        %1433 = vmatmul.mubr.f32.gmra.mrb[0].mxu0 %v1273
        %v1434 = vpop.f32.mrb[0].mxu0
        %v1435 = vadd.f32 %v1296, %v1434
        %v1436 = vpop.f32.mrb[0].mxu0
        %1437 = vmatprep.mubr.f32.mxu0 0.0
        %1438 = vmatmul.mubr.f32.gmra.mrb[0].mxu0 %v1274
        %v1439 = vpop.f32.mrb[0].mxu0
        %v1440 = vadd.f32 %v1296, %v1439
        %v1441 = vpop.f32.mrb[0].mxu0
        %1442 = vdwg.mxu0
        %v1443 = vld [vmem:[%s739] sm:$0x1]
        %v1444 = vld [vmem:[%s742] sm:$0x1]
        %1445 = vadd.xlane.f32.xlu0 %v1365
        %v1446 = vpop.xlane.xlu0 %1445
        %1447 = vadd.xlane.f32.xlu0 %v1370
        %v1448 = vpop.xlane.xlu0 %1447
        %1449 = vadd.xlane.f32.xlu0 %v1375
        %v1450 = vpop.xlane.xlu0 %1449
        %1451 = vadd.xlane.f32.xlu0 %v1380
        %v1452 = vpop.xlane.xlu0 %1451
        %1453 = vadd.xlane.f32.xlu0 %v1385
        %v1454 = vpop.xlane.xlu0 %1453
        %1455 = vadd.xlane.f32.xlu0 %v1390
        %v1456 = vpop.xlane.xlu0 %1455
        %1457 = vadd.xlane.f32.xlu0 %v1395
        %v1458 = vpop.xlane.xlu0 %1457
        %1459 = vadd.xlane.f32.xlu0 %v1400
        %v1460 = vpop.xlane.xlu0 %1459
        %1461 = vadd.xlane.f32.xlu0 %v1405
        %v1462 = vpop.xlane.xlu0 %1461
        %1463 = vadd.xlane.f32.xlu0 %v1410
        %v1464 = vpop.xlane.xlu0 %1463
        %1465 = vadd.xlane.f32.xlu0 %v1415
        %v1466 = vpop.xlane.xlu0 %1465
        %1467 = vadd.xlane.f32.xlu0 %v1420
        %v1468 = vpop.xlane.xlu0 %1467
        %1469 = vadd.xlane.f32.xlu0 %v1425
        %v1470 = vpop.xlane.xlu0 %1469
        %1471 = vadd.xlane.f32.xlu0 %v1430
        %v1472 = vpop.xlane.xlu0 %1471
        %1473 = vadd.xlane.f32.xlu0 %v1435
        %v1474 = vpop.xlane.xlu0 %1473
        %1475 = vadd.xlane.f32.xlu0 %v1440
        %v1476 = vpop.xlane.xlu0 %1475
        %v1477 = vmul.f32 %v1365, %v1365
        %v1478 = vmul.f32 %v1370, %v1370
        %v1479 = vmul.f32 %v1375, %v1375
        %v1480 = vmul.f32 %v1380, %v1380
        %v1481 = vmul.f32 %v1385, %v1385
        %v1482 = vmul.f32 %v1390, %v1390
        %v1483 = vmul.f32 %v1395, %v1395
        %v1484 = vmul.f32 %v1400, %v1400
        %v1485 = vmul.f32 %v1405, %v1405
        %v1486 = vmul.f32 %v1410, %v1410
        %v1487 = vmul.f32 %v1415, %v1415
        %v1488 = vmul.f32 %v1420, %v1420
        %v1489 = vmul.f32 %v1425, %v1425
        %v1490 = vmul.f32 %v1430, %v1430
        %v1491 = vmul.f32 %v1435, %v1435
        %v1492 = vmul.f32 %v1440, %v1440
        %1493 = vadd.xlane.f32.xlu0 %v1477
        %v1494 = vpop.xlane.xlu0 %1493
        %1495 = vadd.xlane.f32.xlu0 %v1478
        %v1496 = vpop.xlane.xlu0 %1495
        %1497 = vadd.xlane.f32.xlu0 %v1479
        %v1498 = vpop.xlane.xlu0 %1497
        %1499 = vadd.xlane.f32.xlu0 %v1480
        %v1500 = vpop.xlane.xlu0 %1499
        %1501 = vadd.xlane.f32.xlu0 %v1481
        %v1502 = vpop.xlane.xlu0 %1501
        %1503 = vadd.xlane.f32.xlu0 %v1482
        %v1504 = vpop.xlane.xlu0 %1503
        %1505 = vadd.xlane.f32.xlu0 %v1483
        %v1506 = vpop.xlane.xlu0 %1505
        %1507 = vadd.xlane.f32.xlu0 %v1484
        %v1508 = vpop.xlane.xlu0 %1507
        %1509 = vadd.xlane.f32.xlu0 %v1485
        %v1510 = vpop.xlane.xlu0 %1509
        %1511 = vadd.xlane.f32.xlu0 %v1486
        %v1512 = vpop.xlane.xlu0 %1511
        %1513 = vadd.xlane.f32.xlu0 %v1487
        %v1514 = vpop.xlane.xlu0 %1513
        %1515 = vadd.xlane.f32.xlu0 %v1488
        %v1516 = vpop.xlane.xlu0 %1515
        %1517 = vadd.xlane.f32.xlu0 %v1489
        %v1518 = vpop.xlane.xlu0 %1517
        %1519 = vadd.xlane.f32.xlu0 %v1490
        %v1520 = vpop.xlane.xlu0 %1519
        %1521 = vadd.xlane.f32.xlu0 %v1491
        %v1522 = vpop.xlane.xlu0 %1521
        %1523 = vadd.xlane.f32.xlu0 %v1492
        %v1524 = vpop.xlane.xlu0 %1523
        %v1525 = vmul.f32 %v1446, 0.0078125
        %v1526 = vmul.f32 %v1448, 0.0078125
        %v1527 = vmul.f32 %v1450, 0.0078125
        %v1528 = vmul.f32 %v1452, 0.0078125
        %v1529 = vmul.f32 %v1454, 0.0078125
        %v1530 = vmul.f32 %v1456, 0.0078125
        %v1531 = vmul.f32 %v1458, 0.0078125
        %v1532 = vmul.f32 %v1460, 0.0078125
        %v1533 = vmul.f32 %v1462, 0.0078125
        %v1534 = vmul.f32 %v1464, 0.0078125
        %v1535 = vmul.f32 %v1466, 0.0078125
        %v1536 = vmul.f32 %v1468, 0.0078125
        %v1537 = vmul.f32 %v1470, 0.0078125
        %v1538 = vmul.f32 %v1472, 0.0078125
        %v1539 = vmul.f32 %v1474, 0.0078125
        %v1540 = vmul.f32 %v1476, 0.0078125
        %v1541 = vmul.f32 %v1494, 0.0078125
        %v1542 = vmul.f32 %v1496, 0.0078125
        %v1543 = vmul.f32 %v1498, 0.0078125
        %v1544 = vmul.f32 %v1500, 0.0078125
        %v1545 = vmul.f32 %v1502, 0.0078125
        %v1546 = vmul.f32 %v1504, 0.0078125
        %v1547 = vmul.f32 %v1506, 0.0078125
        %v1548 = vmul.f32 %v1508, 0.0078125
        %v1549 = vmul.f32 %v1510, 0.0078125
        %v1550 = vmul.f32 %v1512, 0.0078125
        %v1551 = vmul.f32 %v1514, 0.0078125
        %v1552 = vmul.f32 %v1516, 0.0078125
        %v1553 = vmul.f32 %v1518, 0.0078125
        %v1554 = vmul.f32 %v1520, 0.0078125
        %v1555 = vmul.f32 %v1522, 0.0078125
        %v1556 = vmul.f32 %v1524, 0.0078125
        %v1557 = vmul.f32 %v1525, %v1525
        %v1558 = vmul.f32 %v1526, %v1526
        %v1559 = vmul.f32 %v1527, %v1527
        %v1560 = vmul.f32 %v1528, %v1528
        %v1561 = vmul.f32 %v1529, %v1529
        %v1562 = vmul.f32 %v1530, %v1530
        %v1563 = vmul.f32 %v1531, %v1531
        %v1564 = vmul.f32 %v1532, %v1532
        %v1565 = vmul.f32 %v1533, %v1533
        %v1566 = vmul.f32 %v1534, %v1534
        %v1567 = vmul.f32 %v1535, %v1535
        %v1568 = vmul.f32 %v1536, %v1536
        %v1569 = vmul.f32 %v1537, %v1537
        %v1570 = vmul.f32 %v1538, %v1538
        %v1571 = vmul.f32 %v1539, %v1539
        %v1572 = vmul.f32 %v1540, %v1540
        %v1573 = vsub.f32 %v1541, %v1557
        %v1574 = vsub.f32 %v1542, %v1558
        %v1575 = vsub.f32 %v1543, %v1559
        %v1576 = vsub.f32 %v1544, %v1560
        %v1577 = vsub.f32 %v1545, %v1561
        %v1578 = vsub.f32 %v1546, %v1562
        %v1579 = vsub.f32 %v1547, %v1563
        %v1580 = vsub.f32 %v1548, %v1564
        %v1581 = vsub.f32 %v1549, %v1565
        %v1582 = vsub.f32 %v1550, %v1566
        %v1583 = vsub.f32 %v1551, %v1567
        %v1584 = vsub.f32 %v1552, %v1568
        %v1585 = vsub.f32 %v1553, %v1569
        %v1586 = vsub.f32 %v1554, %v1570
        %v1587 = vsub.f32 %v1555, %v1571
        %v1588 = vsub.f32 %v1556, %v1572
        %v1589 = vsub.f32 %v1365, %v1525
        %v1590 = vsub.f32 %v1370, %v1526
        %v1591 = vsub.f32 %v1375, %v1527
        %v1592 = vsub.f32 %v1380, %v1528
        %v1593 = vsub.f32 %v1385, %v1529
        %v1594 = vsub.f32 %v1390, %v1530
        %v1595 = vsub.f32 %v1395, %v1531
        %v1596 = vsub.f32 %v1400, %v1532
        %v1597 = vsub.f32 %v1405, %v1533
        %v1598 = vsub.f32 %v1410, %v1534
        %v1599 = vsub.f32 %v1415, %v1535
        %v1600 = vsub.f32 %v1420, %v1536
        %v1601 = vsub.f32 %v1425, %v1537
        %v1602 = vsub.f32 %v1430, %v1538
        %v1603 = vsub.f32 %v1435, %v1539
        %v1604 = vsub.f32 %v1440, %v1540
        %v1605 = vadd.f32 %v1573, 1e-05
        %v1606 = vadd.f32 %v1574, 1e-05
        %v1607 = vadd.f32 %v1575, 1e-05
        %v1608 = vadd.f32 %v1576, 1e-05
        %v1609 = vadd.f32 %v1577, 1e-05
        %v1610 = vadd.f32 %v1578, 1e-05
        %v1611 = vadd.f32 %v1579, 1e-05
        %v1612 = vadd.f32 %v1580, 1e-05
        %v1613 = vadd.f32 %v1581, 1e-05
        %v1614 = vadd.f32 %v1582, 1e-05
        %v1615 = vadd.f32 %v1583, 1e-05
        %v1616 = vadd.f32 %v1584, 1e-05
        %v1617 = vadd.f32 %v1585, 1e-05
        %v1618 = vadd.f32 %v1586, 1e-05
        %v1619 = vadd.f32 %v1587, 1e-05
        %v1620 = vadd.f32 %v1588, 1e-05
        %v1621 = vrsqrt.pop %v1605
        %v1622 = vrsqrt.pop %v1606
        %v1623 = vrsqrt.pop %v1607
        %v1624 = vrsqrt.pop %v1608
        %v1625 = vrsqrt.pop %v1609
        %v1626 = vrsqrt.pop %v1610
        %v1627 = vrsqrt.pop %v1611
        %v1628 = vrsqrt.pop %v1612
        %v1629 = vrsqrt.pop %v1613
        %v1630 = vrsqrt.pop %v1614
        %v1631 = vrsqrt.pop %v1615
        %v1632 = vrsqrt.pop %v1616
        %v1633 = vrsqrt.pop %v1617
        %v1634 = vrsqrt.pop %v1618
        %v1635 = vrsqrt.pop %v1619
        %v1636 = vrsqrt.pop %v1620
        %v1637 = vmul.f32 %v1589, %v1621
        %v1638 = vmul.f32 %v1590, %v1622
        %v1639 = vmul.f32 %v1591, %v1623
        %v1640 = vmul.f32 %v1592, %v1624
        %v1641 = vmul.f32 %v1593, %v1625
        %v1642 = vmul.f32 %v1594, %v1626
        %v1643 = vmul.f32 %v1595, %v1627
        %v1644 = vmul.f32 %v1596, %v1628
        %v1645 = vmul.f32 %v1597, %v1629
        %v1646 = vmul.f32 %v1598, %v1630
        %v1647 = vmul.f32 %v1599, %v1631
        %v1648 = vmul.f32 %v1600, %v1632
        %v1649 = vmul.f32 %v1601, %v1633
        %v1650 = vmul.f32 %v1602, %v1634
        %v1651 = vmul.f32 %v1603, %v1635
        %v1652 = vmul.f32 %v1604, %v1636
        %v1654 = vlaneseq
        %v1655 = vshrl.u32 %v1654, 7
        %v1656 = vsub.s32 0, %v1655
        %v1657 = vrot.slane %v1443, %v1656
        %v1659 = vmul.f32 %v1637, %v1657
        %v1660 = vmul.f32 %v1638, %v1657
        %v1661 = vmul.f32 %v1639, %v1657
        %v1662 = vmul.f32 %v1640, %v1657
        %v1663 = vmul.f32 %v1641, %v1657
        %v1664 = vmul.f32 %v1642, %v1657
        %v1665 = vmul.f32 %v1643, %v1657
        %v1666 = vmul.f32 %v1644, %v1657
        %v1667 = vmul.f32 %v1645, %v1657
        %v1668 = vmul.f32 %v1646, %v1657
        %v1669 = vmul.f32 %v1647, %v1657
        %v1670 = vmul.f32 %v1648, %v1657
        %v1671 = vmul.f32 %v1649, %v1657
        %v1672 = vmul.f32 %v1650, %v1657
        %v1673 = vmul.f32 %v1651, %v1657
        %v1674 = vmul.f32 %v1652, %v1657
        %v1676 = vlaneseq
        %v1677 = vshrl.u32 %v1676, 7
        %v1678 = vsub.s32 0, %v1677
        %v1679 = vrot.slane %v1444, %v1678
        %v1681 = vadd.f32 %v1659, %v1679
        %v1682 = vadd.f32 %v1660, %v1679
        %v1683 = vadd.f32 %v1661, %v1679
        %v1684 = vadd.f32 %v1662, %v1679
        %v1685 = vadd.f32 %v1663, %v1679
        %v1686 = vadd.f32 %v1664, %v1679
        %v1687 = vadd.f32 %v1665, %v1679
        %v1688 = vadd.f32 %v1666, %v1679
        %v1689 = vadd.f32 %v1667, %v1679
        %v1690 = vadd.f32 %v1668, %v1679
        %v1691 = vadd.f32 %v1669, %v1679
        %v1692 = vadd.f32 %v1670, %v1679
        %v1693 = vadd.f32 %v1671, %v1679
        %v1694 = vadd.f32 %v1672, %v1679
        %v1695 = vadd.f32 %v1673, %v1679
        %v1696 = vadd.f32 %v1674, %v1679
        %vm1697 = vcmp.ge.f32.partialorder %v1681, 0.0
        %vm1698 = vcmp.ge.f32.partialorder %v1682, 0.0
        %vm1699 = vcmp.ge.f32.partialorder %v1683, 0.0
        %vm1700 = vcmp.ge.f32.partialorder %v1684, 0.0
        %vm1701 = vcmp.ge.f32.partialorder %v1685, 0.0
        %vm1702 = vcmp.ge.f32.partialorder %v1686, 0.0
        %vm1703 = vcmp.ge.f32.partialorder %v1687, 0.0
        %vm1704 = vcmp.ge.f32.partialorder %v1688, 0.0
        %vm1705 = vcmp.ge.f32.partialorder %v1689, 0.0
        %vm1706 = vcmp.ge.f32.partialorder %v1690, 0.0
        %vm1707 = vcmp.ge.f32.partialorder %v1691, 0.0
        %vm1708 = vcmp.ge.f32.partialorder %v1692, 0.0
        %vm1709 = vcmp.ge.f32.partialorder %v1693, 0.0
        %vm1710 = vcmp.ge.f32.partialorder %v1694, 0.0
        %vm1711 = vcmp.ge.f32.partialorder %v1695, 0.0
        %vm1712 = vcmp.ge.f32.partialorder %v1696, 0.0
        %v1713 = vmul.f32 %v1681, 0.2
        %v1714 = vmul.f32 %v1682, 0.2
        %v1715 = vmul.f32 %v1683, 0.2
        %v1716 = vmul.f32 %v1684, 0.2
        %v1717 = vmul.f32 %v1685, 0.2
        %v1718 = vmul.f32 %v1686, 0.2
        %v1719 = vmul.f32 %v1687, 0.2
        %v1720 = vmul.f32 %v1688, 0.2
        %v1721 = vmul.f32 %v1689, 0.2
        %v1722 = vmul.f32 %v1690, 0.2
        %v1723 = vmul.f32 %v1691, 0.2
        %v1724 = vmul.f32 %v1692, 0.2
        %v1725 = vmul.f32 %v1693, 0.2
        %v1726 = vmul.f32 %v1694, 0.2
        %v1727 = vmul.f32 %v1695, 0.2
        %v1728 = vmul.f32 %v1696, 0.2
        %v1729 = vsel %vm1697, %v1681, %v1713
        %v1730 = vsel %vm1698, %v1682, %v1714
        %v1731 = vsel %vm1699, %v1683, %v1715
        %v1732 = vsel %vm1700, %v1684, %v1716
        %v1733 = vsel %vm1701, %v1685, %v1717
        %v1734 = vsel %vm1702, %v1686, %v1718
        %v1735 = vsel %vm1703, %v1687, %v1719
        %v1736 = vsel %vm1704, %v1688, %v1720
        %v1737 = vsel %vm1705, %v1689, %v1721
        %v1738 = vsel %vm1706, %v1690, %v1722
        %v1739 = vsel %vm1707, %v1691, %v1723
        %v1740 = vsel %vm1708, %v1692, %v1724
        %v1741 = vsel %vm1709, %v1693, %v1725
        %v1742 = vsel %vm1710, %v1694, %v1726
        %v1743 = vsel %vm1711, %v1695, %v1727
        %v1744 = vsel %vm1712, %v1696, %v1728
        %v1745 = vld [vmem:[%s651] sm:$0xff]
        %v1746 = vld [vmem:[%s651 + $0x8] sm:$0xff]
        %v1747 = vld [vmem:[%s651 + $0x10] sm:$0xff]
        %v1748 = vld [vmem:[%s651 + $0x18] sm:$0xff]
        %v1749 = vld [vmem:[%s651 + $0x20] sm:$0xff]
        %v1750 = vld [vmem:[%s651 + $0x28] sm:$0xff]
        %v1751 = vld [vmem:[%s651 + $0x30] sm:$0xff]
        %v1752 = vld [vmem:[%s651 + $0x38] sm:$0xff]
        %v1753 = vld [vmem:[%s651 + $0x40] sm:$0xff]
        %v1754 = vld [vmem:[%s651 + $0x48] sm:$0xff]
        %v1755 = vld [vmem:[%s651 + $0x50] sm:$0xff]
        %v1756 = vld [vmem:[%s651 + $0x58] sm:$0xff]
        %v1757 = vld [vmem:[%s651 + $0x60] sm:$0xff]
        %v1758 = vld [vmem:[%s651 + $0x68] sm:$0xff]
        %v1759 = vld [vmem:[%s651 + $0x70] sm:$0xff]
        %v1760 = vld [vmem:[%s651 + $0x78] sm:$0xff]
        %v1761 = vld [vmem:[%s745] sm:$0x1]
        %v1763 = vlaneseq
        %v1764 = vshrl.u32 %v1763, 7
        %v1765 = vsub.s32 0, %v1764
        %v1766 = vrot.slane %v1761, %v1765
        %1768 = vmatprep.subr.mxu0 0.0
        %1769 = vmatpush1.msra.mxu0 %v1745
        %1770 = vmatprep.subr.mxu0 0.0
        %1771 = vmatpush1.msra.mxu0 %v1746
        %1772 = vmatprep.subr.mxu0 0.0
        %1773 = vmatpush1.msra.mxu0 %v1747
        %1774 = vmatprep.subr.mxu0 0.0
        %1775 = vmatpush1.msra.mxu0 %v1748
        %1776 = vmatprep.subr.mxu0 0.0
        %1777 = vmatpush1.msra.mxu0 %v1749
        %1778 = vmatprep.subr.mxu0 0.0
        %1779 = vmatpush1.msra.mxu0 %v1750
        %1780 = vmatprep.subr.mxu0 0.0
        %1781 = vmatpush1.msra.mxu0 %v1751
        %1782 = vmatprep.subr.mxu0 0.0
        %1783 = vmatpush1.msra.mxu0 %v1752
        %1784 = vmatprep.subr.mxu0 0.0
        %1785 = vmatpush1.msra.mxu0 %v1753
        %1786 = vmatprep.subr.mxu0 0.0
        %1787 = vmatpush1.msra.mxu0 %v1754
        %1788 = vmatprep.subr.mxu0 0.0
        %1789 = vmatpush1.msra.mxu0 %v1755
        %1790 = vmatprep.subr.mxu0 0.0
        %1791 = vmatpush1.msra.mxu0 %v1756
        %1792 = vmatprep.subr.mxu0 0.0
        %1793 = vmatpush1.msra.mxu0 %v1757
        %1794 = vmatprep.subr.mxu0 0.0
        %1795 = vmatpush1.msra.mxu0 %v1758
        %1796 = vmatprep.subr.mxu0 0.0
        %1797 = vmatpush1.msra.mxu0 %v1759
        %1798 = vmatprep.subr.mxu0 0.0
        %1799 = vmatpush1.msra.mxu0 %v1760
        %1800 = vmatprep.subr.mxu0 0.0
        %1801 = vmatpush1.msra.mxu0 0.0
        %1802 = vmatprep.subr.mxu0 0.0
        %1803 = vmatpush1.msra.mxu0 0.0
        %1804 = vmatprep.subr.mxu0 0.0
        %1805 = vmatpush1.msra.mxu0 0.0
        %1806 = vmatprep.subr.mxu0 0.0
        %1807 = vmatpush1.msra.mxu0 0.0
        %1808 = vmatprep.subr.mxu0 0.0
        %1809 = vmatpush1.msra.mxu0 0.0
        %1810 = vmatprep.subr.mxu0 0.0
        %1811 = vmatpush1.msra.mxu0 0.0
        %1812 = vmatprep.subr.mxu0 0.0
        %1813 = vmatpush1.msra.mxu0 0.0
        %1814 = vmatprep.subr.mxu0 0.0
        %1815 = vmatpush1.msra.mxu0 0.0
        %1816 = vmatprep.subr.mxu0 0.0
        %1817 = vmatpush1.msra.mxu0 0.0
        %1818 = vmatprep.subr.mxu0 0.0
        %1819 = vmatpush1.msra.mxu0 0.0
        %1820 = vmatprep.subr.mxu0 0.0
        %1821 = vmatpush1.msra.mxu0 0.0
        %1822 = vmatprep.subr.mxu0 0.0
        %1823 = vmatpush1.msra.mxu0 0.0
        %1824 = vmatprep.subr.mxu0 0.0
        %1825 = vmatpush1.msra.mxu0 0.0
        %1826 = vmatprep.subr.mxu0 0.0
        %1827 = vmatpush1.msra.mxu0 0.0
        %1828 = vmatprep.subr.mxu0 0.0
        %1829 = vmatpush1.msra.mxu0 0.0
        %1830 = vmatprep.subr.mxu0 0.0
        %1831 = vmatpush1.msra.mxu0 0.0
        %1832 = vmatprep.mubr.f32.mxu0 0.0
        %1833 = vmatmul.mubr.f32.gmra.mrb[0].mxu0 %v1729
        %v1834 = vpop.f32.mrb[0].mxu0
        %v1835 = vadd.f32 %v1766, %v1834
        %v1836 = vpop.f32.mrb[0].mxu0
        %1837 = vmatprep.mubr.f32.mxu0 0.0
        %1838 = vmatmul.mubr.f32.gmra.mrb[0].mxu0 %v1730
        %v1839 = vpop.f32.mrb[0].mxu0
        %v1840 = vadd.f32 %v1766, %v1839
        %v1841 = vpop.f32.mrb[0].mxu0
        %1842 = vmatprep.mubr.f32.mxu0 0.0
        %1843 = vmatmul.mubr.f32.gmra.mrb[0].mxu0 %v1731
        %v1844 = vpop.f32.mrb[0].mxu0
        %v1845 = vadd.f32 %v1766, %v1844
        %v1846 = vpop.f32.mrb[0].mxu0
        %1847 = vmatprep.mubr.f32.mxu0 0.0
        %1848 = vmatmul.mubr.f32.gmra.mrb[0].mxu0 %v1732
        %v1849 = vpop.f32.mrb[0].mxu0
        %v1850 = vadd.f32 %v1766, %v1849
        %v1851 = vpop.f32.mrb[0].mxu0
        %1852 = vmatprep.mubr.f32.mxu0 0.0
        %1853 = vmatmul.mubr.f32.gmra.mrb[0].mxu0 %v1733
        %v1854 = vpop.f32.mrb[0].mxu0
        %v1855 = vadd.f32 %v1766, %v1854
        %v1856 = vpop.f32.mrb[0].mxu0
        %1857 = vmatprep.mubr.f32.mxu0 0.0
        %1858 = vmatmul.mubr.f32.gmra.mrb[0].mxu0 %v1734
        %v1859 = vpop.f32.mrb[0].mxu0
        %v1860 = vadd.f32 %v1766, %v1859
        %v1861 = vpop.f32.mrb[0].mxu0
        %1862 = vmatprep.mubr.f32.mxu0 0.0
        %1863 = vmatmul.mubr.f32.gmra.mrb[0].mxu0 %v1735
        %v1864 = vpop.f32.mrb[0].mxu0
        %v1865 = vadd.f32 %v1766, %v1864
        %v1866 = vpop.f32.mrb[0].mxu0
        %1867 = vmatprep.mubr.f32.mxu0 0.0
        %1868 = vmatmul.mubr.f32.gmra.mrb[0].mxu0 %v1736
        %v1869 = vpop.f32.mrb[0].mxu0
        %v1870 = vadd.f32 %v1766, %v1869
        %v1871 = vpop.f32.mrb[0].mxu0
        %1872 = vmatprep.mubr.f32.mxu0 0.0
        %1873 = vmatmul.mubr.f32.gmra.mrb[0].mxu0 %v1737
        %v1874 = vpop.f32.mrb[0].mxu0
        %v1875 = vadd.f32 %v1766, %v1874
        %v1876 = vpop.f32.mrb[0].mxu0
        %1877 = vmatprep.mubr.f32.mxu0 0.0
        %1878 = vmatmul.mubr.f32.gmra.mrb[0].mxu0 %v1738
        %v1879 = vpop.f32.mrb[0].mxu0
        %v1880 = vadd.f32 %v1766, %v1879
        %v1881 = vpop.f32.mrb[0].mxu0
        %1882 = vmatprep.mubr.f32.mxu0 0.0
        %1883 = vmatmul.mubr.f32.gmra.mrb[0].mxu0 %v1739
        %v1884 = vpop.f32.mrb[0].mxu0
        %v1885 = vadd.f32 %v1766, %v1884
        %v1886 = vpop.f32.mrb[0].mxu0
        %1887 = vmatprep.mubr.f32.mxu0 0.0
        %1888 = vmatmul.mubr.f32.gmra.mrb[0].mxu0 %v1740
        %v1889 = vpop.f32.mrb[0].mxu0
        %v1890 = vadd.f32 %v1766, %v1889
        %v1891 = vpop.f32.mrb[0].mxu0
        %1892 = vmatprep.mubr.f32.mxu0 0.0
        %1893 = vmatmul.mubr.f32.gmra.mrb[0].mxu0 %v1741
        %v1894 = vpop.f32.mrb[0].mxu0
        %v1895 = vadd.f32 %v1766, %v1894
        %v1896 = vpop.f32.mrb[0].mxu0
        %1897 = vmatprep.mubr.f32.mxu0 0.0
        %1898 = vmatmul.mubr.f32.gmra.mrb[0].mxu0 %v1742
        %v1899 = vpop.f32.mrb[0].mxu0
        %v1900 = vadd.f32 %v1766, %v1899
        %v1901 = vpop.f32.mrb[0].mxu0
        %1902 = vmatprep.mubr.f32.mxu0 0.0
        %1903 = vmatmul.mubr.f32.gmra.mrb[0].mxu0 %v1743
        %v1904 = vpop.f32.mrb[0].mxu0
        %v1905 = vadd.f32 %v1766, %v1904
        %v1906 = vpop.f32.mrb[0].mxu0
        %1907 = vmatprep.mubr.f32.mxu0 0.0
        %1908 = vmatmul.mubr.f32.gmra.mrb[0].mxu0 %v1744
        %v1909 = vpop.f32.mrb[0].mxu0
        %v1910 = vadd.f32 %v1766, %v1909
        %v1911 = vpop.f32.mrb[0].mxu0
        %1912 = vdwg.mxu0
        %v1913 = vld [vmem:[%s748] sm:$0x1]
        %v1914 = vld [vmem:[%s751] sm:$0x1]
        %1915 = vadd.xlane.f32.xlu0 %v1835
        %v1916 = vpop.xlane.xlu0 %1915
        %1917 = vadd.xlane.f32.xlu0 %v1840
        %v1918 = vpop.xlane.xlu0 %1917
        %1919 = vadd.xlane.f32.xlu0 %v1845
        %v1920 = vpop.xlane.xlu0 %1919
        %1921 = vadd.xlane.f32.xlu0 %v1850
        %v1922 = vpop.xlane.xlu0 %1921
        %1923 = vadd.xlane.f32.xlu0 %v1855
        %v1924 = vpop.xlane.xlu0 %1923
        %1925 = vadd.xlane.f32.xlu0 %v1860
        %v1926 = vpop.xlane.xlu0 %1925
        %1927 = vadd.xlane.f32.xlu0 %v1865
        %v1928 = vpop.xlane.xlu0 %1927
        %1929 = vadd.xlane.f32.xlu0 %v1870
        %v1930 = vpop.xlane.xlu0 %1929
        %1931 = vadd.xlane.f32.xlu0 %v1875
        %v1932 = vpop.xlane.xlu0 %1931
        %1933 = vadd.xlane.f32.xlu0 %v1880
        %v1934 = vpop.xlane.xlu0 %1933
        %1935 = vadd.xlane.f32.xlu0 %v1885
        %v1936 = vpop.xlane.xlu0 %1935
        %1937 = vadd.xlane.f32.xlu0 %v1890
        %v1938 = vpop.xlane.xlu0 %1937
        %1939 = vadd.xlane.f32.xlu0 %v1895
        %v1940 = vpop.xlane.xlu0 %1939
        %1941 = vadd.xlane.f32.xlu0 %v1900
        %v1942 = vpop.xlane.xlu0 %1941
        %1943 = vadd.xlane.f32.xlu0 %v1905
        %v1944 = vpop.xlane.xlu0 %1943
        %1945 = vadd.xlane.f32.xlu0 %v1910
        %v1946 = vpop.xlane.xlu0 %1945
        %v1947 = vmul.f32 %v1835, %v1835
        %v1948 = vmul.f32 %v1840, %v1840
        %v1949 = vmul.f32 %v1845, %v1845
        %v1950 = vmul.f32 %v1850, %v1850
        %v1951 = vmul.f32 %v1855, %v1855
        %v1952 = vmul.f32 %v1860, %v1860
        %v1953 = vmul.f32 %v1865, %v1865
        %v1954 = vmul.f32 %v1870, %v1870
        %v1955 = vmul.f32 %v1875, %v1875
        %v1956 = vmul.f32 %v1880, %v1880
        %v1957 = vmul.f32 %v1885, %v1885
        %v1958 = vmul.f32 %v1890, %v1890
        %v1959 = vmul.f32 %v1895, %v1895
        %v1960 = vmul.f32 %v1900, %v1900
        %v1961 = vmul.f32 %v1905, %v1905
        %v1962 = vmul.f32 %v1910, %v1910
        %1963 = vadd.xlane.f32.xlu0 %v1947
        %v1964 = vpop.xlane.xlu0 %1963
        %1965 = vadd.xlane.f32.xlu0 %v1948
        %v1966 = vpop.xlane.xlu0 %1965
        %1967 = vadd.xlane.f32.xlu0 %v1949
        %v1968 = vpop.xlane.xlu0 %1967
        %1969 = vadd.xlane.f32.xlu0 %v1950
        %v1970 = vpop.xlane.xlu0 %1969
        %1971 = vadd.xlane.f32.xlu0 %v1951
        %v1972 = vpop.xlane.xlu0 %1971
        %1973 = vadd.xlane.f32.xlu0 %v1952
        %v1974 = vpop.xlane.xlu0 %1973
        %1975 = vadd.xlane.f32.xlu0 %v1953
        %v1976 = vpop.xlane.xlu0 %1975
        %1977 = vadd.xlane.f32.xlu0 %v1954
        %v1978 = vpop.xlane.xlu0 %1977
        %1979 = vadd.xlane.f32.xlu0 %v1955
        %v1980 = vpop.xlane.xlu0 %1979
        %1981 = vadd.xlane.f32.xlu0 %v1956
        %v1982 = vpop.xlane.xlu0 %1981
        %1983 = vadd.xlane.f32.xlu0 %v1957
        %v1984 = vpop.xlane.xlu0 %1983
        %1985 = vadd.xlane.f32.xlu0 %v1958
        %v1986 = vpop.xlane.xlu0 %1985
        %1987 = vadd.xlane.f32.xlu0 %v1959
        %v1988 = vpop.xlane.xlu0 %1987
        %1989 = vadd.xlane.f32.xlu0 %v1960
        %v1990 = vpop.xlane.xlu0 %1989
        %1991 = vadd.xlane.f32.xlu0 %v1961
        %v1992 = vpop.xlane.xlu0 %1991
        %1993 = vadd.xlane.f32.xlu0 %v1962
        %v1994 = vpop.xlane.xlu0 %1993
        %v1995 = vmul.f32 %v1916, 0.0078125
        %v1996 = vmul.f32 %v1918, 0.0078125
        %v1997 = vmul.f32 %v1920, 0.0078125
        %v1998 = vmul.f32 %v1922, 0.0078125
        %v1999 = vmul.f32 %v1924, 0.0078125
        %v2000 = vmul.f32 %v1926, 0.0078125
        %v2001 = vmul.f32 %v1928, 0.0078125
        %v2002 = vmul.f32 %v1930, 0.0078125
        %v2003 = vmul.f32 %v1932, 0.0078125
        %v2004 = vmul.f32 %v1934, 0.0078125
        %v2005 = vmul.f32 %v1936, 0.0078125
        %v2006 = vmul.f32 %v1938, 0.0078125
        %v2007 = vmul.f32 %v1940, 0.0078125
        %v2008 = vmul.f32 %v1942, 0.0078125
        %v2009 = vmul.f32 %v1944, 0.0078125
        %v2010 = vmul.f32 %v1946, 0.0078125
        %v2011 = vmul.f32 %v1964, 0.0078125
        %v2012 = vmul.f32 %v1966, 0.0078125
        %v2013 = vmul.f32 %v1968, 0.0078125
        %v2014 = vmul.f32 %v1970, 0.0078125
        %v2015 = vmul.f32 %v1972, 0.0078125
        %v2016 = vmul.f32 %v1974, 0.0078125
        %v2017 = vmul.f32 %v1976, 0.0078125
        %v2018 = vmul.f32 %v1978, 0.0078125
        %v2019 = vmul.f32 %v1980, 0.0078125
        %v2020 = vmul.f32 %v1982, 0.0078125
        %v2021 = vmul.f32 %v1984, 0.0078125
        %v2022 = vmul.f32 %v1986, 0.0078125
        %v2023 = vmul.f32 %v1988, 0.0078125
        %v2024 = vmul.f32 %v1990, 0.0078125
        %v2025 = vmul.f32 %v1992, 0.0078125
        %v2026 = vmul.f32 %v1994, 0.0078125
        %v2027 = vmul.f32 %v1995, %v1995
        %v2028 = vmul.f32 %v1996, %v1996
        %v2029 = vmul.f32 %v1997, %v1997
        %v2030 = vmul.f32 %v1998, %v1998
        %v2031 = vmul.f32 %v1999, %v1999
        %v2032 = vmul.f32 %v2000, %v2000
        %v2033 = vmul.f32 %v2001, %v2001
        %v2034 = vmul.f32 %v2002, %v2002
        %v2035 = vmul.f32 %v2003, %v2003
        %v2036 = vmul.f32 %v2004, %v2004
        %v2037 = vmul.f32 %v2005, %v2005
        %v2038 = vmul.f32 %v2006, %v2006
        %v2039 = vmul.f32 %v2007, %v2007
        %v2040 = vmul.f32 %v2008, %v2008
        %v2041 = vmul.f32 %v2009, %v2009
        %v2042 = vmul.f32 %v2010, %v2010
        %v2043 = vsub.f32 %v2011, %v2027
        %v2044 = vsub.f32 %v2012, %v2028
        %v2045 = vsub.f32 %v2013, %v2029
        %v2046 = vsub.f32 %v2014, %v2030
        %v2047 = vsub.f32 %v2015, %v2031
        %v2048 = vsub.f32 %v2016, %v2032
        %v2049 = vsub.f32 %v2017, %v2033
        %v2050 = vsub.f32 %v2018, %v2034
        %v2051 = vsub.f32 %v2019, %v2035
        %v2052 = vsub.f32 %v2020, %v2036
        %v2053 = vsub.f32 %v2021, %v2037
        %v2054 = vsub.f32 %v2022, %v2038
        %v2055 = vsub.f32 %v2023, %v2039
        %v2056 = vsub.f32 %v2024, %v2040
        %v2057 = vsub.f32 %v2025, %v2041
        %v2058 = vsub.f32 %v2026, %v2042
        %v2059 = vsub.f32 %v1835, %v1995
        %v2060 = vsub.f32 %v1840, %v1996
        %v2061 = vsub.f32 %v1845, %v1997
        %v2062 = vsub.f32 %v1850, %v1998
        %v2063 = vsub.f32 %v1855, %v1999
        %v2064 = vsub.f32 %v1860, %v2000
        %v2065 = vsub.f32 %v1865, %v2001
        %v2066 = vsub.f32 %v1870, %v2002
        %v2067 = vsub.f32 %v1875, %v2003
        %v2068 = vsub.f32 %v1880, %v2004
        %v2069 = vsub.f32 %v1885, %v2005
        %v2070 = vsub.f32 %v1890, %v2006
        %v2071 = vsub.f32 %v1895, %v2007
        %v2072 = vsub.f32 %v1900, %v2008
        %v2073 = vsub.f32 %v1905, %v2009
        %v2074 = vsub.f32 %v1910, %v2010
        %v2075 = vadd.f32 %v2043, 1e-05
        %v2076 = vadd.f32 %v2044, 1e-05
        %v2077 = vadd.f32 %v2045, 1e-05
        %v2078 = vadd.f32 %v2046, 1e-05
        %v2079 = vadd.f32 %v2047, 1e-05
        %v2080 = vadd.f32 %v2048, 1e-05
        %v2081 = vadd.f32 %v2049, 1e-05
        %v2082 = vadd.f32 %v2050, 1e-05
        %v2083 = vadd.f32 %v2051, 1e-05
        %v2084 = vadd.f32 %v2052, 1e-05
        %v2085 = vadd.f32 %v2053, 1e-05
        %v2086 = vadd.f32 %v2054, 1e-05
        %v2087 = vadd.f32 %v2055, 1e-05
        %v2088 = vadd.f32 %v2056, 1e-05
        %v2089 = vadd.f32 %v2057, 1e-05
        %v2090 = vadd.f32 %v2058, 1e-05
        %v2091 = vrsqrt.pop %v2075
        %v2092 = vrsqrt.pop %v2076
        %v2093 = vrsqrt.pop %v2077
        %v2094 = vrsqrt.pop %v2078
        %v2095 = vrsqrt.pop %v2079
        %v2096 = vrsqrt.pop %v2080
        %v2097 = vrsqrt.pop %v2081
        %v2098 = vrsqrt.pop %v2082
        %v2099 = vrsqrt.pop %v2083
        %v2100 = vrsqrt.pop %v2084
        %v2101 = vrsqrt.pop %v2085
        %v2102 = vrsqrt.pop %v2086
        %v2103 = vrsqrt.pop %v2087
        %v2104 = vrsqrt.pop %v2088
        %v2105 = vrsqrt.pop %v2089
        %v2106 = vrsqrt.pop %v2090
        %v2107 = vmul.f32 %v2059, %v2091
        %v2108 = vmul.f32 %v2060, %v2092
        %v2109 = vmul.f32 %v2061, %v2093
        %v2110 = vmul.f32 %v2062, %v2094
        %v2111 = vmul.f32 %v2063, %v2095
        %v2112 = vmul.f32 %v2064, %v2096
        %v2113 = vmul.f32 %v2065, %v2097
        %v2114 = vmul.f32 %v2066, %v2098
        %v2115 = vmul.f32 %v2067, %v2099
        %v2116 = vmul.f32 %v2068, %v2100
        %v2117 = vmul.f32 %v2069, %v2101
        %v2118 = vmul.f32 %v2070, %v2102
        %v2119 = vmul.f32 %v2071, %v2103
        %v2120 = vmul.f32 %v2072, %v2104
        %v2121 = vmul.f32 %v2073, %v2105
        %v2122 = vmul.f32 %v2074, %v2106
        %v2124 = vlaneseq
        %v2125 = vshrl.u32 %v2124, 7
        %v2126 = vsub.s32 0, %v2125
        %v2127 = vrot.slane %v1913, %v2126
        %v2129 = vmul.f32 %v2107, %v2127
        %v2130 = vmul.f32 %v2108, %v2127
        %v2131 = vmul.f32 %v2109, %v2127
        %v2132 = vmul.f32 %v2110, %v2127
        %v2133 = vmul.f32 %v2111, %v2127
        %v2134 = vmul.f32 %v2112, %v2127
        %v2135 = vmul.f32 %v2113, %v2127
        %v2136 = vmul.f32 %v2114, %v2127
        %v2137 = vmul.f32 %v2115, %v2127
        %v2138 = vmul.f32 %v2116, %v2127
        %v2139 = vmul.f32 %v2117, %v2127
        %v2140 = vmul.f32 %v2118, %v2127
        %v2141 = vmul.f32 %v2119, %v2127
        %v2142 = vmul.f32 %v2120, %v2127
        %v2143 = vmul.f32 %v2121, %v2127
        %v2144 = vmul.f32 %v2122, %v2127
        %v2146 = vlaneseq
        %v2147 = vshrl.u32 %v2146, 7
        %v2148 = vsub.s32 0, %v2147
        %v2149 = vrot.slane %v1914, %v2148
        %v2151 = vadd.f32 %v2129, %v2149
        %v2152 = vadd.f32 %v2130, %v2149
        %v2153 = vadd.f32 %v2131, %v2149
        %v2154 = vadd.f32 %v2132, %v2149
        %v2155 = vadd.f32 %v2133, %v2149
        %v2156 = vadd.f32 %v2134, %v2149
        %v2157 = vadd.f32 %v2135, %v2149
        %v2158 = vadd.f32 %v2136, %v2149
        %v2159 = vadd.f32 %v2137, %v2149
        %v2160 = vadd.f32 %v2138, %v2149
        %v2161 = vadd.f32 %v2139, %v2149
        %v2162 = vadd.f32 %v2140, %v2149
        %v2163 = vadd.f32 %v2141, %v2149
        %v2164 = vadd.f32 %v2142, %v2149
        %v2165 = vadd.f32 %v2143, %v2149
        %v2166 = vadd.f32 %v2144, %v2149
        %s2167 = sld [smem:[#allocation3 + %s40]]
        %v2168 = vstv %s2167
        %v2169 = vmul.f32 %v2151, %v2168
        %v2170 = vmul.f32 %v2152, %v2168
        %v2171 = vmul.f32 %v2153, %v2168
        %v2172 = vmul.f32 %v2154, %v2168
        %v2173 = vmul.f32 %v2155, %v2168
        %v2174 = vmul.f32 %v2156, %v2168
        %v2175 = vmul.f32 %v2157, %v2168
        %v2176 = vmul.f32 %v2158, %v2168
        %v2177 = vmul.f32 %v2159, %v2168
        %v2178 = vmul.f32 %v2160, %v2168
        %v2179 = vmul.f32 %v2161, %v2168
        %v2180 = vmul.f32 %v2162, %v2168
        %v2181 = vmul.f32 %v2163, %v2168
        %v2182 = vmul.f32 %v2164, %v2168
        %v2183 = vmul.f32 %v2165, %v2168
        %v2184 = vmul.f32 %v2166, %v2168
        %v2185 = vadd.f32 %v2169, %v1259
        %v2186 = vadd.f32 %v2170, %v1260
        %v2187 = vadd.f32 %v2171, %v1261
        %v2188 = vadd.f32 %v2172, %v1262
        %v2189 = vadd.f32 %v2173, %v1263
        %v2190 = vadd.f32 %v2174, %v1264
        %v2191 = vadd.f32 %v2175, %v1265
        %v2192 = vadd.f32 %v2176, %v1266
        %v2193 = vadd.f32 %v2177, %v1267
        %v2194 = vadd.f32 %v2178, %v1268
        %v2195 = vadd.f32 %v2179, %v1269
        %v2196 = vadd.f32 %v2180, %v1270
        %v2197 = vadd.f32 %v2181, %v1271
        %v2198 = vadd.f32 %v2182, %v1272
        %v2199 = vadd.f32 %v2183, %v1273
        %v2200 = vadd.f32 %v2184, %v1274
        %vm2201 = vcmp.ge.f32.partialorder %v2185, 0.0
        %vm2202 = vcmp.ge.f32.partialorder %v2186, 0.0
        %vm2203 = vcmp.ge.f32.partialorder %v2187, 0.0
        %vm2204 = vcmp.ge.f32.partialorder %v2188, 0.0
        %vm2205 = vcmp.ge.f32.partialorder %v2189, 0.0
        %vm2206 = vcmp.ge.f32.partialorder %v2190, 0.0
        %vm2207 = vcmp.ge.f32.partialorder %v2191, 0.0
        %vm2208 = vcmp.ge.f32.partialorder %v2192, 0.0
        %vm2209 = vcmp.ge.f32.partialorder %v2193, 0.0
        %vm2210 = vcmp.ge.f32.partialorder %v2194, 0.0
        %vm2211 = vcmp.ge.f32.partialorder %v2195, 0.0
        %vm2212 = vcmp.ge.f32.partialorder %v2196, 0.0
        %vm2213 = vcmp.ge.f32.partialorder %v2197, 0.0
        %vm2214 = vcmp.ge.f32.partialorder %v2198, 0.0
        %vm2215 = vcmp.ge.f32.partialorder %v2199, 0.0
        %vm2216 = vcmp.ge.f32.partialorder %v2200, 0.0
        %v2217 = vmul.f32 %v2185, 0.2
        %v2218 = vmul.f32 %v2186, 0.2
        %v2219 = vmul.f32 %v2187, 0.2
        %v2220 = vmul.f32 %v2188, 0.2
        %v2221 = vmul.f32 %v2189, 0.2
        %v2222 = vmul.f32 %v2190, 0.2
        %v2223 = vmul.f32 %v2191, 0.2
        %v2224 = vmul.f32 %v2192, 0.2
        %v2225 = vmul.f32 %v2193, 0.2
        %v2226 = vmul.f32 %v2194, 0.2
        %v2227 = vmul.f32 %v2195, 0.2
        %v2228 = vmul.f32 %v2196, 0.2
        %v2229 = vmul.f32 %v2197, 0.2
        %v2230 = vmul.f32 %v2198, 0.2
        %v2231 = vmul.f32 %v2199, 0.2
        %v2232 = vmul.f32 %v2200, 0.2
        %v2233 = vsel %vm2201, %v2185, %v2217
        %v2234 = vsel %vm2202, %v2186, %v2218
        %v2235 = vsel %vm2203, %v2187, %v2219
        %v2236 = vsel %vm2204, %v2188, %v2220
        %v2237 = vsel %vm2205, %v2189, %v2221
        %v2238 = vsel %vm2206, %v2190, %v2222
        %v2239 = vsel %vm2207, %v2191, %v2223
        %v2240 = vsel %vm2208, %v2192, %v2224
        %v2241 = vsel %vm2209, %v2193, %v2225
        %v2242 = vsel %vm2210, %v2194, %v2226
        %v2243 = vsel %vm2211, %v2195, %v2227
        %v2244 = vsel %vm2212, %v2196, %v2228
        %v2245 = vsel %vm2213, %v2197, %v2229
        %v2246 = vsel %vm2214, %v2198, %v2230
        %v2247 = vsel %vm2215, %v2199, %v2231
        %v2248 = vsel %vm2216, %v2200, %v2232
        %2249 = vst [vmem:[#allocation2] sm:$0xff] %v2233
        %2250 = vst [vmem:[#allocation2 + $0x8] sm:$0xff] %v2234
        %2251 = vst [vmem:[#allocation2 + $0x10] sm:$0xff] %v2235
        %2252 = vst [vmem:[#allocation2 + $0x18] sm:$0xff] %v2236
        %2253 = vst [vmem:[#allocation2 + $0x20] sm:$0xff] %v2237
        %2254 = vst [vmem:[#allocation2 + $0x28] sm:$0xff] %v2238
        %2255 = vst [vmem:[#allocation2 + $0x30] sm:$0xff] %v2239
        %2256 = vst [vmem:[#allocation2 + $0x38] sm:$0xff] %v2240
        %2257 = vst [vmem:[#allocation2 + $0x40] sm:$0xff] %v2241
        %2258 = vst [vmem:[#allocation2 + $0x48] sm:$0xff] %v2242
        %2259 = vst [vmem:[#allocation2 + $0x50] sm:$0xff] %v2243
        %2260 = vst [vmem:[#allocation2 + $0x58] sm:$0xff] %v2244
        %2261 = vst [vmem:[#allocation2 + $0x60] sm:$0xff] %v2245
        %2262 = vst [vmem:[#allocation2 + $0x68] sm:$0xff] %v2246
        %2263 = vst [vmem:[#allocation2 + $0x70] sm:$0xff] %v2247
        %2264 = vst [vmem:[#allocation2 + $0x78] sm:$0xff] %v2248
        %p2265 = scmp.eq.s32.totalorder %s40, 1
        // Predicated region
        $region113: #{tpu_custom_call.1} parent=83 // pred_check
          %p2266 = pneg %p2265
        $region114: #{tpu_custom_call.1} parent=83 // pred_check_branch
          %2268 = sbr.rel (%p2266) target = $region116
        $region115: #{tpu_custom_call.1} parent=83 // pred_region
          %v2269 = vld [vmem:[#allocation12] sm:$0xff]
          %v2270 = vld [vmem:[#allocation12 + $0x8] sm:$0xff]
          %v2271 = vld [vmem:[#allocation12 + $0x10] sm:$0xff]
          %v2272 = vld [vmem:[#allocation12 + $0x18] sm:$0xff]
          %v2273 = vld [vmem:[#allocation12 + $0x20] sm:$0xff]
          %v2274 = vld [vmem:[#allocation12 + $0x28] sm:$0xff]
          %v2275 = vld [vmem:[#allocation12 + $0x30] sm:$0xff]
          %v2276 = vld [vmem:[#allocation12 + $0x38] sm:$0xff]
          %v2277 = vld [vmem:[#allocation12 + $0x40] sm:$0xff]
          %v2278 = vld [vmem:[#allocation12 + $0x48] sm:$0xff]
          %v2279 = vld [vmem:[#allocation12 + $0x50] sm:$0xff]
          %v2280 = vld [vmem:[#allocation12 + $0x58] sm:$0xff]
          %v2281 = vld [vmem:[#allocation12 + $0x60] sm:$0xff]
          %v2282 = vld [vmem:[#allocation12 + $0x68] sm:$0xff]
          %v2283 = vld [vmem:[#allocation12 + $0x70] sm:$0xff]
          %v2284 = vld [vmem:[#allocation12 + $0x78] sm:$0xff]
          %v2285 = vld [vmem:[%s15] sm:$0x1]
          %v2287 = vlaneseq
          %v2288 = vshrl.u32 %v2287, 7
          %v2289 = vsub.s32 0, %v2288
          %v2290 = vrot.slane %v2285, %v2289
          %2292 = vmatprep.subr.mxu0 0.0
          %2293 = vmatpush1.msra.mxu0 %v2269
          %2294 = vmatprep.subr.mxu0 0.0
          %2295 = vmatpush1.msra.mxu0 %v2270
          %2296 = vmatprep.subr.mxu0 0.0
          %2297 = vmatpush1.msra.mxu0 %v2271
          %2298 = vmatprep.subr.mxu0 0.0
          %2299 = vmatpush1.msra.mxu0 %v2272
          %2300 = vmatprep.subr.mxu0 0.0
          %2301 = vmatpush1.msra.mxu0 %v2273
          %2302 = vmatprep.subr.mxu0 0.0
          %2303 = vmatpush1.msra.mxu0 %v2274
          %2304 = vmatprep.subr.mxu0 0.0
          %2305 = vmatpush1.msra.mxu0 %v2275
          %2306 = vmatprep.subr.mxu0 0.0
          %2307 = vmatpush1.msra.mxu0 %v2276
          %2308 = vmatprep.subr.mxu0 0.0
          %2309 = vmatpush1.msra.mxu0 %v2277
          %2310 = vmatprep.subr.mxu0 0.0
          %2311 = vmatpush1.msra.mxu0 %v2278
          %2312 = vmatprep.subr.mxu0 0.0
          %2313 = vmatpush1.msra.mxu0 %v2279
          %2314 = vmatprep.subr.mxu0 0.0
          %2315 = vmatpush1.msra.mxu0 %v2280
          %2316 = vmatprep.subr.mxu0 0.0
          %2317 = vmatpush1.msra.mxu0 %v2281
          %2318 = vmatprep.subr.mxu0 0.0
          %2319 = vmatpush1.msra.mxu0 %v2282
          %2320 = vmatprep.subr.mxu0 0.0
          %2321 = vmatpush1.msra.mxu0 %v2283
          %2322 = vmatprep.subr.mxu0 0.0
          %2323 = vmatpush1.msra.mxu0 %v2284
          %2324 = vmatprep.subr.mxu0 0.0
          %2325 = vmatpush1.msra.mxu0 0.0
          %2326 = vmatprep.subr.mxu0 0.0
          %2327 = vmatpush1.msra.mxu0 0.0
          %2328 = vmatprep.subr.mxu0 0.0
          %2329 = vmatpush1.msra.mxu0 0.0
          %2330 = vmatprep.subr.mxu0 0.0
          %2331 = vmatpush1.msra.mxu0 0.0
          %2332 = vmatprep.subr.mxu0 0.0
          %2333 = vmatpush1.msra.mxu0 0.0
          %2334 = vmatprep.subr.mxu0 0.0
          %2335 = vmatpush1.msra.mxu0 0.0
          %2336 = vmatprep.subr.mxu0 0.0
          %2337 = vmatpush1.msra.mxu0 0.0
          %2338 = vmatprep.subr.mxu0 0.0
          %2339 = vmatpush1.msra.mxu0 0.0
          %2340 = vmatprep.subr.mxu0 0.0
          %2341 = vmatpush1.msra.mxu0 0.0
          %2342 = vmatprep.subr.mxu0 0.0
          %2343 = vmatpush1.msra.mxu0 0.0
          %2344 = vmatprep.subr.mxu0 0.0
          %2345 = vmatpush1.msra.mxu0 0.0
          %2346 = vmatprep.subr.mxu0 0.0
          %2347 = vmatpush1.msra.mxu0 0.0
          %2348 = vmatprep.subr.mxu0 0.0
          %2349 = vmatpush1.msra.mxu0 0.0
          %2350 = vmatprep.subr.mxu0 0.0
          %2351 = vmatpush1.msra.mxu0 0.0
          %2352 = vmatprep.subr.mxu0 0.0
          %2353 = vmatpush1.msra.mxu0 0.0
          %2354 = vmatprep.subr.mxu0 0.0
          %2355 = vmatpush1.msra.mxu0 0.0
          %2356 = vmatprep.mubr.f32.mxu0 0.0
          %2357 = vmatmul.mubr.f32.gmra.mrb[0].mxu0 %v2233
          %v2358 = vpop.f32.mrb[0].mxu0
          %v2359 = vadd.f32 %v2290, %v2358
          %v2360 = vpop.f32.mrb[0].mxu0
          %2361 = vmatprep.mubr.f32.mxu0 0.0
          %2362 = vmatmul.mubr.f32.gmra.mrb[0].mxu0 %v2234
          %v2363 = vpop.f32.mrb[0].mxu0
          %v2364 = vadd.f32 %v2290, %v2363
          %v2365 = vpop.f32.mrb[0].mxu0
          %2366 = vmatprep.mubr.f32.mxu0 0.0
          %2367 = vmatmul.mubr.f32.gmra.mrb[0].mxu0 %v2235
          %v2368 = vpop.f32.mrb[0].mxu0
          %v2369 = vadd.f32 %v2290, %v2368
          %v2370 = vpop.f32.mrb[0].mxu0
          %2371 = vmatprep.mubr.f32.mxu0 0.0
          %2372 = vmatmul.mubr.f32.gmra.mrb[0].mxu0 %v2236
          %v2373 = vpop.f32.mrb[0].mxu0
          %v2374 = vadd.f32 %v2290, %v2373
          %v2375 = vpop.f32.mrb[0].mxu0
          %2376 = vmatprep.mubr.f32.mxu0 0.0
          %2377 = vmatmul.mubr.f32.gmra.mrb[0].mxu0 %v2237
          %v2378 = vpop.f32.mrb[0].mxu0
          %v2379 = vadd.f32 %v2290, %v2378
          %v2380 = vpop.f32.mrb[0].mxu0
          %2381 = vmatprep.mubr.f32.mxu0 0.0
          %2382 = vmatmul.mubr.f32.gmra.mrb[0].mxu0 %v2238
          %v2383 = vpop.f32.mrb[0].mxu0
          %v2384 = vadd.f32 %v2290, %v2383
          %v2385 = vpop.f32.mrb[0].mxu0
          %2386 = vmatprep.mubr.f32.mxu0 0.0
          %2387 = vmatmul.mubr.f32.gmra.mrb[0].mxu0 %v2239
          %v2388 = vpop.f32.mrb[0].mxu0
          %v2389 = vadd.f32 %v2290, %v2388
          %v2390 = vpop.f32.mrb[0].mxu0
          %2391 = vmatprep.mubr.f32.mxu0 0.0
          %2392 = vmatmul.mubr.f32.gmra.mrb[0].mxu0 %v2240
          %v2393 = vpop.f32.mrb[0].mxu0
          %v2394 = vadd.f32 %v2290, %v2393
          %v2395 = vpop.f32.mrb[0].mxu0
          %2396 = vmatprep.mubr.f32.mxu0 0.0
          %2397 = vmatmul.mubr.f32.gmra.mrb[0].mxu0 %v2241
          %v2398 = vpop.f32.mrb[0].mxu0
          %v2399 = vadd.f32 %v2290, %v2398
          %v2400 = vpop.f32.mrb[0].mxu0
          %2401 = vmatprep.mubr.f32.mxu0 0.0
          %2402 = vmatmul.mubr.f32.gmra.mrb[0].mxu0 %v2242
          %v2403 = vpop.f32.mrb[0].mxu0
          %v2404 = vadd.f32 %v2290, %v2403
          %v2405 = vpop.f32.mrb[0].mxu0
          %2406 = vmatprep.mubr.f32.mxu0 0.0
          %2407 = vmatmul.mubr.f32.gmra.mrb[0].mxu0 %v2243
          %v2408 = vpop.f32.mrb[0].mxu0
          %v2409 = vadd.f32 %v2290, %v2408
          %v2410 = vpop.f32.mrb[0].mxu0
          %2411 = vmatprep.mubr.f32.mxu0 0.0
          %2412 = vmatmul.mubr.f32.gmra.mrb[0].mxu0 %v2244
          %v2413 = vpop.f32.mrb[0].mxu0
          %v2414 = vadd.f32 %v2290, %v2413
          %v2415 = vpop.f32.mrb[0].mxu0
          %2416 = vmatprep.mubr.f32.mxu0 0.0
          %2417 = vmatmul.mubr.f32.gmra.mrb[0].mxu0 %v2245
          %v2418 = vpop.f32.mrb[0].mxu0
          %v2419 = vadd.f32 %v2290, %v2418
          %v2420 = vpop.f32.mrb[0].mxu0
          %2421 = vmatprep.mubr.f32.mxu0 0.0
          %2422 = vmatmul.mubr.f32.gmra.mrb[0].mxu0 %v2246
          %v2423 = vpop.f32.mrb[0].mxu0
          %v2424 = vadd.f32 %v2290, %v2423
          %v2425 = vpop.f32.mrb[0].mxu0
          %2426 = vmatprep.mubr.f32.mxu0 0.0
          %2427 = vmatmul.mubr.f32.gmra.mrb[0].mxu0 %v2247
          %v2428 = vpop.f32.mrb[0].mxu0
          %v2429 = vadd.f32 %v2290, %v2428
          %v2430 = vpop.f32.mrb[0].mxu0
          %2431 = vmatprep.mubr.f32.mxu0 0.0
          %2432 = vmatmul.mubr.f32.gmra.mrb[0].mxu0 %v2248
          %v2433 = vpop.f32.mrb[0].mxu0
          %v2434 = vadd.f32 %v2290, %v2433
          %v2435 = vpop.f32.mrb[0].mxu0
          %2436 = vdwg.mxu0
          %2437 = vst [vmem:[%s732] sm:$0xff] %v2359
          %2438 = vst [vmem:[%s732 + $0x8] sm:$0xff] %v2364
          %2439 = vst [vmem:[%s732 + $0x10] sm:$0xff] %v2369
          %2440 = vst [vmem:[%s732 + $0x18] sm:$0xff] %v2374
          %2441 = vst [vmem:[%s732 + $0x20] sm:$0xff] %v2379
          %2442 = vst [vmem:[%s732 + $0x28] sm:$0xff] %v2384
          %2443 = vst [vmem:[%s732 + $0x30] sm:$0xff] %v2389
          %2444 = vst [vmem:[%s732 + $0x38] sm:$0xff] %v2394
          %2445 = vst [vmem:[%s732 + $0x40] sm:$0xff] %v2399
          %2446 = vst [vmem:[%s732 + $0x48] sm:$0xff] %v2404
          %2447 = vst [vmem:[%s732 + $0x50] sm:$0xff] %v2409
          %2448 = vst [vmem:[%s732 + $0x58] sm:$0xff] %v2414
          %2449 = vst [vmem:[%s732 + $0x60] sm:$0xff] %v2419
          %2450 = vst [vmem:[%s732 + $0x68] sm:$0xff] %v2424
          %2451 = vst [vmem:[%s732 + $0x70] sm:$0xff] %v2429
          %2452 = vst [vmem:[%s732 + $0x78] sm:$0xff] %v2434
        $region116: #{tpu_custom_call.1} parent=83 // pred_fallthru
          _
        %s2453 = sand.u32 %s436, 1
        %s2454 = scalar_lea.sflag [#allocation5], %s2453
        %s2455 = sand.u32 %s436, 1
        %s2456 = smul.addr %s2455, 128
        %s2457 = scalar_lea.vmem [#allocation13], %s2456
        // Predicated region
        $region117: #{tpu_custom_call.1} parent=83 // pred_check
          %p2458 = pneg %p446
        $region118: #{tpu_custom_call.1} parent=83 // pred_check_branch
          %2460 = sbr.rel (%p2458) target = $region120
        $region119: #{tpu_custom_call.1} parent=83 // pred_region
          %s2461 = smul.u32 16, %s39
          %s2463 = ssub.s32 2048, 2048
          %2464 = vsyncadd %s2454, %s2463
          %s2465 = smul.addr %s2461, 128
          %s2466 = scalar_lea.hbm %s16, %s2465
          %s2467 = sshll.u32 %s2457, 4
          %s2468 = int_to_ptr.vmem [resolvable:$true] %s2467
          %2473 = dma.vmem_to_hbm [thread:$0]  %s2468, 2048, %s2466, %s2454, 128, 128, 8
        $region120: #{tpu_custom_call.1} parent=83 // pred_fallthru
          _
      $region84: #{tpu_custom_call.1} parent=5 // pred_fallthru
        _
      %p2474 = scmp.le.s32.totalorder 2, %s30
      // Predicated region
      $region121: #{tpu_custom_call.1} parent=5 // pred_check
        %p2475 = pneg %p2474
      $region122: #{tpu_custom_call.1} parent=5 // pred_check_branch
        %2477 = sbr.rel (%p2475) target = $region124
      $region123: #{tpu_custom_call.1} parent=5 // pred_region
        %s2478 = ssub.s32 %s30, 2
        // Predicated region
        $region125: #{tpu_custom_call.1} parent=123 // pred_check
          %p2479 = pneg %p452
        $region126: #{tpu_custom_call.1} parent=123 // pred_check_branch
          %2481 = sbr.rel (%p2479) target = $region128
        $region127: #{tpu_custom_call.1} parent=123 // pred_region
          %s2482 = sand.u32 %s437, 1
          %s2483 = scalar_lea.sflag [#allocation5], %s2482
          %s2484 = sand.u32 %s437, 1
          %s2485 = smul.addr %s2484, 128
          %s2486 = scalar_lea.vmem [#allocation13], %s2485
          %2487 = dma.done %s2483, 2048
        $region128: #{tpu_custom_call.1} parent=123 // pred_fallthru
          _
      $region124: #{tpu_custom_call.1} parent=5 // pred_fallthru
        _
    $region6: #{tpu_custom_call.1} parent=1 // loop_footer
      %s34 = sadd.s32 1, %s30
    $region7: #{tpu_custom_call.1} parent=1 // loop_footer_branch
      %29 = sbr.rel target = $region3
    $region8: #{tpu_custom_call.1} parent=1 // loop_exit
      _
    %2488 = vsyncpa [#allocation4], 1
    %s2489 = scalar_lea.sflag [#allocation4], 1
    %2490 = vsyncpa %s2489, 1
    %2491 = vsyncpa [#allocation9], 1
    %2492 = vsyncpa [#allocation5], 1
    %s2493 = scalar_lea.sflag [#allocation5], 1
    %2494 = vsyncpa %s2493, 1
    %2495 = vsyncpa [#allocation6], 1
    %s2496 = scalar_lea.sflag [#allocation6], 1
    %2497 = vsyncpa %s2496, 1

</llo_original>
